<compile_context>
chip_gen: v7x
topology: tpu7x:2x2x1
jax: 0.10.0
libtpu: 0.0.40
codegen_flags: <defaults>
</compile_context>

<pallas_src>
import functools
import math

import numpy as np

import jax
import jax.numpy as jnp
from jax.experimental import pallas as pl
from jax.experimental.pallas import tpu as pltpu


# --------------------------------------------------------------------------
# Kernel
# --------------------------------------------------------------------------
def _mdconv_kernel(effk_ref, x_ref, w_ref, o_ref, xpad_ref, acc_ref, *,
                   kmax, stride, dilate, pad, wlo, strip_rows, dynamic_k):
    """One (channel-tile, batch) grid cell of the fused mixed depthwise conv.

    effk_ref : SMEM (num_c_tiles,) int32 -- max kernel size of each channel tile
    x_ref    : (1, H, W, Ct)             -- input tile, channels on lanes
    w_ref    : (kmax, kmax, Ct)          -- packed per-channel taps (zero-padded)
    o_ref    : (1, Ho, Wo, Ct)           -- output tile
    xpad_ref : (H+2p, wlo+W+p, Ct)       -- haloed input; interior starts at the
                                            sublane-aligned column `wlo`
    acc_ref  : (strip_rows, Wo, Ct) f32  -- per-strip accumulator (dynamic-k path)
    """
    _, H, W, Ct = x_ref.shape
    _, Ho, Wo, _ = o_ref.shape
    Hp, Wps, _ = xpad_ref.shape
    ctap = (kmax - 1) // 2
    worig = wlo - pad                      # scratch column of logical padded col 0
    sdt = xpad_ref.dtype
    f32 = jnp.float32

    # ---- build halo in VMEM (borders re-zeroed every step: correct under
    #      "parallel" sharding where each core owns a private scratch) --------
    if pad > 0:
        zrows = jnp.zeros((pad, Wps, Ct), sdt)
        xpad_ref[0:pad, :, :] = zrows
        xpad_ref[Hp - pad:Hp, :, :] = zrows
    if wlo > 0:
        xpad_ref[:, 0:wlo, :] = jnp.zeros((Hp, wlo, Ct), sdt)
    if Wps - (wlo + W) > 0:
        xpad_ref[:, wlo + W:Wps, :] = jnp.zeros((Hp, Wps - wlo - W, Ct), sdt)
    # Interior copy: column offset `wlo` is a multiple of 8 -> unshifted,
    # unmasked stores; single pass, no dtype cast.
    xpad_ref[pad:pad + H, wlo:wlo + W, :] = x_ref[0]

    if dynamic_k:
        eff_k = effk_ref[pl.program_id(0)]

    def wtap(i, j):
        # (1, 1, Ct) tap weight straight from the ref; broadcasts over the
        # strip without materializing a (rows, Wo, Ct) temporary per tap.
        return w_ref[i:i + 1, j:j + 1, :].astype(f32)

    num_strips = Ho // strip_rows
    for s in range(num_strips):            # static -> unrolled, strips bounded
        row0 = s * strip_rows
        h_base = row0 * stride

        if stride == 1:
            row_span = strip_rows + (kmax - 1) * dilate

            def column_partial(j):
                # One sublane-shifted load per column offset j (k loads per
                # strip instead of k^2); per-tap row offsets are pure
                # major-axis slices of the loaded value.
                w0 = worig + j * dilate
                col = xpad_ref[h_base:h_base + row_span, w0:w0 + Wo, :].astype(f32)
                part = None
                for i in range(kmax):
                    win = col[i * dilate:i * dilate + strip_rows]
                    term = win * wtap(i, j)
                    part = term if part is None else part + term
                return part
        else:
            def column_partial(j):
                # stride > 1 (dilate == 1): strided loads fetch the already
                # subsampled window -> ~stride^2 fewer bytes, no per-tap gather.
                w0 = worig + j * dilate
                part = None
                for i in range(kmax):
                    win = xpad_ref[pl.ds(h_base + i * dilate, strip_rows, stride),
                                   pl.ds(w0, Wo, stride), :].astype(f32)
                    term = win * wtap(i, j)
                    part = term if part is None else part + term
                return part

        if dynamic_k:
            # Register-accumulate each column, one small VMEM RMW per *active*
            # column (<= kmax per strip vs kmax^2 before).  Columns outside
            # this tile's largest kernel are skipped entirely (their packed
            # weights are all-zero, so skipping is always safe).
            acc_ref[...] = column_partial(ctap)        # center column: always live
            for j in range(kmax):
                if j == ctap:
                    continue
                need_k = 2 * abs(j - ctap) + 1

                @pl.when(eff_k >= need_k)
                def _(j=j):
                    acc_ref[...] += column_partial(j)

            o_ref[0, row0:row0 + strip_rows, :, :] = acc_ref[...].astype(o_ref.dtype)
        else:
            # Uniform kernel size across the tile: whole strip accumulator in
            # registers, single store per strip (no acc_ref traffic at all).
            acc = column_partial(ctap)
            for j in range(kmax):
                if j != ctap:
                    acc = acc + column_partial(j)
            o_ref[0, row0:row0 + strip_rows, :, :] = acc.astype(o_ref.dtype)


# --------------------------------------------------------------------------
# Tiling / budgeting helpers
# --------------------------------------------------------------------------
def _vmem_budgets():
    try:
        cap = int(pltpu.get_tpu_info().vmem_capacity_bytes)
    except Exception:
        cap = 64 * 1024 * 1024             # assume the smallest (v7x per-TC) VMEM
    # Leave headroom for Mosaic internal scratch / pipeline buffers.
    return int(cap * 0.60), int(cap * 0.75)


def _pick_strip_rows(Ho, Wo, ct):
    """Rows per output strip: ~8K f32 accumulator (a handful of vregs), but
    also bound the number of statically unrolled strips."""
    target = max(1, 8192 // max(1, Wo * ct))
    target = max(target, -(-Ho // 16))     # keep the static strip unroll bounded
    target = min(target, Ho)
    divs = [d for d in range(1, Ho + 1) if Ho % d == 0]
    return max(d for d in divs if d <= target)


# --------------------------------------------------------------------------
# Wrappers
# --------------------------------------------------------------------------
def mdconv_forward_nhwc(x_nhwc, w_packed, channel_k, *, stride, dilate):
    """NHWC-native entry point. x: (N,H,W,C); w_packed: (kmax,kmax,C);
    channel_k: host int array (C,) with each channel's true kernel size."""
    N, H, W, C = x_nhwc.shape
    kmax = int(w_packed.shape[0])
    assert len(channel_k) == C
    pad = (kmax - 1) // 2 * dilate
    Ho = (H + 2 * pad - dilate * (kmax - 1) - 1) // stride + 1
    Wo = (W + 2 * pad - dilate * (kmax - 1) - 1) // stride + 1
    Hp = H + 2 * pad
    wlo = -(-pad // 8) * 8                  # interior column start, sublane aligned
    Wps = wlo + W + pad
    isz = x_nhwc.dtype.itemsize

    tile_budget, hard_limit = _vmem_budgets()

    def est(ct):
        sr = _pick_strip_rows(Ho, Wo, ct)
        row_span = (sr - 1) * stride + (kmax - 1) * dilate + 1
        b_in = H * W * ct * isz
        b_out = Ho * Wo * ct * isz
        b_w = kmax * kmax * ct * 4
        b_scr = Hp * Wps * ct * isz
        b_acc = sr * Wo * ct * 4
        b_tmp = 4 * row_span * Wo * ct * 4  # live temporaries in the unrolled loop
        return 2 * (b_in + b_out + b_w) + b_scr + b_acc + b_tmp

    if C % 128 == 0:
        cands = [c for c in (512, 256, 128) if C % c == 0]
    else:
        # Last block dim == full C keeps the (8,128) rule satisfied for any C.
        # TODO(synk): for C < 128 fold W into the lane axis to restore lane occupancy.
        cands = [C]
    fitting = [c for c in cands if est(c) <= tile_budget] or [min(cands)]
    # Prefer a tile size that yields >= 8 grid cells (2 TCs + pipeline depth).
    enough_cells = [c for c in fitting if N * (C // c) >= 8]
    ct = max(enough_cells) if enough_cells else min(fitting)
    assert C % ct == 0

    n_ctiles = C // ct
    strip_rows = _pick_strip_rows(Ho, Wo, ct)
    assert Ho % strip_rows == 0
    tile_k = np.asarray(channel_k, np.int32).reshape(n_ctiles, ct).max(axis=1)
    dynamic_k = bool(tile_k.min() != tile_k.max())
    vmem_limit = int(min(hard_limit, max(2 * est(ct), 32 * 1024 * 1024)))

    kernel = functools.partial(
        _mdconv_kernel, kmax=kmax, stride=stride, dilate=dilate, pad=pad,
        wlo=wlo, strip_rows=strip_rows, dynamic_k=dynamic_k)

    return pl.pallas_call(
        kernel,
        out_shape=jax.ShapeDtypeStruct((N, Ho, Wo, C), x_nhwc.dtype),
        grid_spec=pltpu.PrefetchScalarGridSpec(
            num_scalar_prefetch=1,
            grid=(n_ctiles, N),            # batch fastest: weight block reused
            in_specs=[
                pl.BlockSpec((1, H, W, ct), lambda c, n, effk: (n, 0, 0, c)),
                pl.BlockSpec((kmax, kmax, ct), lambda c, n, effk: (0, 0, c)),
            ],
            out_specs=pl.BlockSpec((1, Ho, Wo, ct), lambda c, n, effk: (n, 0, 0, c)),
            scratch_shapes=[
                pltpu.VMEM((Hp, Wps, ct), x_nhwc.dtype),       # haloed input tile
                pltpu.VMEM((strip_rows, Wo, ct), jnp.float32),  # strip accumulator
            ],
        ),
        compiler_params=pltpu.CompilerParams(
            dimension_semantics=("parallel", "parallel"),
            vmem_limit_bytes=vmem_limit,
        ),
    )(jnp.asarray(tile_k, jnp.int32), x_nhwc, w_packed)


def mdconv_forward(x, w_packed, channel_k, *, stride, dilate):
    """NCHW convenience wrapper (PyTorch layout).  In a channels-last network,
    call mdconv_forward_nhwc directly so the layout transposes fold away."""
    x_nhwc = jnp.transpose(x, (0, 2, 3, 1))
    out = mdconv_forward_nhwc(x_nhwc, w_packed, channel_k,
                              stride=stride, dilate=dilate)
    return jnp.transpose(out, (0, 3, 1, 2))


# --------------------------------------------------------------------------
# Module
# --------------------------------------------------------------------------
class MDConv:
    """JAX/Pallas port of the PyTorch MDConv module (bias=False depthwise convs)."""

    def __init__(self, in_planes, kernel_sizes, stride=1, dilate=1, *, key):
        self.num_groups = len(kernel_sizes)
        assert in_planes % self.num_groups == 0
        self.sub_hidden_dim = in_planes // self.num_groups
        assert stride in (1, 2)
        dilate = 1 if stride > 1 else dilate
        self.stride = stride
        self.dilate = dilate
        self.kernel_sizes = list(kernel_sizes)
        self.kmax = max(self.kernel_sizes)
        # Fusing groups by centering smaller filters inside a kmax x kmax tap
        # grid requires matching parity (MixNet kernels are all odd).
        assert all((self.kmax - k) % 2 == 0 for k in self.kernel_sizes)

        # Deterministic init matching PyTorch Conv2d default (kaiming-uniform
        # bound 1/sqrt(fan_in), fan_in = k*k for depthwise).
        self.weights = []
        packed = jnp.zeros((in_planes, self.kmax, self.kmax), jnp.float32)
        for idx, k in enumerate(self.kernel_sizes):
            wkey = jax.random.fold_in(key, idx)
            bound = 1.0 / math.sqrt(k * k)
            w = jax.random.uniform(
                wkey, (self.sub_hidden_dim, k, k), jnp.float32, -bound, bound)
            self.weights.append(w)
            off = (self.kmax - k) // 2
            c0 = idx * self.sub_hidden_dim
            packed = packed.at[c0:c0 + self.sub_hidden_dim,
                               off:off + k, off:off + k].set(w)
        # (kmax, kmax, C): channel dim last so taps are lane vectors in-kernel.
        self.w_packed = jnp.transpose(packed, (1, 2, 0))
        # True kernel size per channel (host array) -> per-tile k for tap skipping.
        self.channel_k = np.repeat(np.asarray(self.kernel_sizes, np.int32),
                                   self.sub_hidden_dim)

    def __call__(self, x):
        return mdconv_forward(x, self.w_packed, self.channel_k,
                              stride=self.stride, dilate=self.dilate)


# --------------------------------------------------------------------------
# Reference + tests
# --------------------------------------------------------------------------
def _reference(x, module):
    """Pure-JAX reference using lax.conv_general_dilated (per-group, NCHW)."""
    chunks = jnp.split(x, module.num_groups, axis=1)
    outs = []
    for g, k in enumerate(module.kernel_sizes):
        pad = (k - 1) // 2 * module.dilate
        w = module.weights[g][:, None, :, :]  # (C, 1, k, k) OIHW depthwise
        o = jax.lax.conv_general_dilated(
            chunks[g], w,
            window_strides=(module.stride, module.stride),
            padding=[(pad, pad), (pad, pad)],
            rhs_dilation=(module.dilate, module.dilate),
            dimension_numbers=("NCHW", "OIHW", "NCHW"),
            feature_group_count=module.sub_hidden_dim,
        )
        outs.append(o)
    return jnp.concatenate(outs, axis=1)


if __name__ == "__main__":
    key = jax.random.PRNGKey(0)
    cases = [
        # (N, C, HW, kernel_sizes, stride, dilate)
        (2, 4, 16, [3, 5], 1, 1),        # canonical toy case
        (1, 6, 16, [3, 5, 7], 1, 1),     # three mixed kernel sizes
        (1, 4, 16, [3], 1, 2),           # single group with dilation
        (1, 8, 16, [3, 5], 2, 1),        # stride 2 (strided-window load path)
        (1, 1024, 16, [3, 5], 1, 1),     # lane-dense 128-ch tiles; per-tile
                                         # kernel-size skipping (dynamic path)
    ]
    for idx, (N, C, HW, ks, stride, dilate) in enumerate(cases):
        ckey = jax.random.fold_in(key, idx)
        xkey, wkey = jax.random.split(ckey)
        x = jax.random.normal(xkey, (N, C, HW, HW), dtype=jnp.float32)
        mdconv = MDConv(C, ks, stride=stride, dilate=dilate, key=wkey)

        out = jax.block_until_ready(mdconv(x))
        ref = jax.block_until_ready(_reference(x, mdconv))
        assert out.shape == ref.shape, (idx, out.shape, ref.shape)
        assert jnp.allclose(out, ref, atol=1e-4, rtol=1e-5), f"case {idx} mismatch"

    print("KERNEL_OK")
</pallas_src>

<mosaic_0001>
module attributes {stable_mosaic.version = 11 : i64} {
  func.func @_mdconv_kernel(%arg0: i32, %arg1: i32, %arg2: memref<1xi32, #tpu.memory_space<smem>>, %arg3: memref<1x16x16x4xf32, #tpu.memory_space<vmem>>, %arg4: memref<5x5x4xf32, #tpu.memory_space<vmem>>, %arg5: memref<1x16x16x4xf32, #tpu.memory_space<vmem>>, %arg6: memref<20x26x4xf32, #tpu.memory_space<vmem>>, %arg7: memref<16x16x4xf32, #tpu.memory_space<vmem>>) attributes {dimension_semantics = [#tpu.dimension_semantics<parallel>, #tpu.dimension_semantics<parallel>], iteration_bounds = array<i64: 1, 2>, scalar_prefetch = 1 : i64, scratch_operands = 2 : i64, tpu.core_type = #tpu.core_type<tc>, window_params = [{transform_indices = @transform_0, window_bounds = array<i64: 1, 16, 16, 4>}, {transform_indices = @transform_1, window_bounds = array<i64: 5, 5, 4>}, {transform_indices = @transform_2, window_bounds = array<i64: 1, 16, 16, 4>}]} {
    %cst = arith.constant 0.000000e+00 : f32
    %0 = vector.broadcast %cst : f32 to vector<2x26x4xf32>
    %c0 = arith.constant 0 : index
    %c0_0 = arith.constant 0 : index
    %c0_1 = arith.constant 0 : index
    %1 = vector.load %arg6[%c0, %c0_0, %c0_1] : memref<20x26x4xf32, #tpu.memory_space<vmem>>, vector<2x26x4xf32>
    tpu.vector_store %arg6[%c0, %c0_0, %c0_1], %0 {strides = array<i32>} : memref<20x26x4xf32, #tpu.memory_space<vmem>>, vector<2x26x4xf32>,
    %c18 = arith.constant 18 : index
    %c0_2 = arith.constant 0 : index
    %c0_3 = arith.constant 0 : index
    %2 = vector.load %arg6[%c18, %c0_2, %c0_3] : memref<20x26x4xf32, #tpu.memory_space<vmem>>, vector<2x26x4xf32>
    tpu.vector_store %arg6[%c18, %c0_2, %c0_3], %0 {strides = array<i32>} : memref<20x26x4xf32, #tpu.memory_space<vmem>>, vector<2x26x4xf32>,
    %cst_4 = arith.constant 0.000000e+00 : f32
    %3 = vector.broadcast %cst_4 : f32 to vector<20x8x4xf32>
    %c0_5 = arith.constant 0 : index
    %c0_6 = arith.constant 0 : index
    %c0_7 = arith.constant 0 : index
    %4 = vector.load %arg6[%c0_5, %c0_6, %c0_7] : memref<20x26x4xf32, #tpu.memory_space<vmem>>, vector<20x8x4xf32>
    tpu.vector_store %arg6[%c0_5, %c0_6, %c0_7], %3 {strides = array<i32>} : memref<20x26x4xf32, #tpu.memory_space<vmem>>, vector<20x8x4xf32>,
    %cst_8 = arith.constant 0.000000e+00 : f32
    %5 = vector.broadcast %cst_8 : f32 to vector<20x2x4xf32>
    %c0_9 = arith.constant 0 : index
    %c24 = arith.constant 24 : index
    %c0_10 = arith.constant 0 : index
    %6 = vector.load %arg6[%c0_9, %c24, %c0_10] : memref<20x26x4xf32, #tpu.memory_space<vmem>>, vector<20x2x4xf32>
    tpu.vector_store %arg6[%c0_9, %c24, %c0_10], %5 {strides = array<i32>} : memref<20x26x4xf32, #tpu.memory_space<vmem>>, vector<20x2x4xf32>,
    %c0_11 = arith.constant 0 : index
    %c0_12 = arith.constant 0 : index
    %c0_13 = arith.constant 0 : index
    %c0_14 = arith.constant 0 : index
    %7 = vector.load %arg3[%c0_11, %c0_12, %c0_13, %c0_14] : memref<1x16x16x4xf32, #tpu.memory_space<vmem>>, vector<1x16x16x4xf32>
    %8 = vector.shape_cast %7 : vector<1x16x16x4xf32> to vector<16x16x4xf32>
    %c2 = arith.constant 2 : index
    %c8 = arith.constant 8 : index
    %c0_15 = arith.constant 0 : index
    %9 = vector.load %arg6[%c2, %c8, %c0_15] : memref<20x26x4xf32, #tpu.memory_space<vmem>>, vector<16x16x4xf32>
    tpu.vector_store %arg6[%c2, %c8, %c0_15], %8 {strides = array<i32>} : memref<20x26x4xf32, #tpu.memory_space<vmem>>, vector<16x16x4xf32>,
    %c0_16 = arith.constant 0 : index
    %c8_17 = arith.constant 8 : index
    %c0_18 = arith.constant 0 : index
    %10 = vector.load %arg6[%c0_16, %c8_17, %c0_18] : memref<20x26x4xf32, #tpu.memory_space<vmem>>, vector<20x16x4xf32>
    %11 = vector.extract_strided_slice %10 {offsets = [0, 0, 0], sizes = [16, 16, 4], strides = [1, 1, 1]} : vector<20x16x4xf32> to vector<16x16x4xf32>
    %c0_19 = arith.constant 0 : index
    %c2_20 = arith.constant 2 : index
    %c0_21 = arith.constant 0 : index
    %12 = vector.load %arg4[%c0_19, %c2_20, %c0_21] : memref<5x5x4xf32, #tpu.memory_space<vmem>>, vector<1x1x4xf32>
    %13 = vector.broadcast %12 : vector<1x1x4xf32> to vector<16x16x4xf32>
    %14 = arith.mulf %11, %13 : vector<16x16x4xf32>
    %15 = vector.extract_strided_slice %10 {offsets = [1, 0, 0], sizes = [16, 16, 4], strides = [1, 1, 1]} : vector<20x16x4xf32> to vector<16x16x4xf32>
    %c1 = arith.constant 1 : index
    %c2_22 = arith.constant 2 : index
    %c0_23 = arith.constant 0 : index
    %16 = vector.load %arg4[%c1, %c2_22, %c0_23] : memref<5x5x4xf32, #tpu.memory_space<vmem>>, vector<1x1x4xf32>
    %17 = vector.broadcast %16 : vector<1x1x4xf32> to vector<16x16x4xf32>
    %18 = arith.mulf %15, %17 : vector<16x16x4xf32>
    %19 = arith.addf %14, %18 : vector<16x16x4xf32>
    %20 = vector.extract_strided_slice %10 {offsets = [2, 0, 0], sizes = [16, 16, 4], strides = [1, 1, 1]} : vector<20x16x4xf32> to vector<16x16x4xf32>
    %c2_24 = arith.constant 2 : index
    %c2_25 = arith.constant 2 : index
    %c0_26 = arith.constant 0 : index
    %21 = vector.load %arg4[%c2_24, %c2_25, %c0_26] : memref<5x5x4xf32, #tpu.memory_space<vmem>>, vector<1x1x4xf32>
    %22 = vector.broadcast %21 : vector<1x1x4xf32> to vector<16x16x4xf32>
    %23 = arith.mulf %20, %22 : vector<16x16x4xf32>
    %24 = arith.addf %19, %23 : vector<16x16x4xf32>
    %25 = vector.extract_strided_slice %10 {offsets = [3, 0, 0], sizes = [16, 16, 4], strides = [1, 1, 1]} : vector<20x16x4xf32> to vector<16x16x4xf32>
    %c3 = arith.constant 3 : index
    %c2_27 = arith.constant 2 : index
    %c0_28 = arith.constant 0 : index
    %26 = vector.load %arg4[%c3, %c2_27, %c0_28] : memref<5x5x4xf32, #tpu.memory_space<vmem>>, vector<1x1x4xf32>
    %27 = vector.broadcast %26 : vector<1x1x4xf32> to vector<16x16x4xf32>
    %28 = arith.mulf %25, %27 : vector<16x16x4xf32>
    %29 = arith.addf %24, %28 : vector<16x16x4xf32>
    %30 = vector.extract_strided_slice %10 {offsets = [4, 0, 0], sizes = [16, 16, 4], strides = [1, 1, 1]} : vector<20x16x4xf32> to vector<16x16x4xf32>
    %c4 = arith.constant 4 : index
    %c2_29 = arith.constant 2 : index
    %c0_30 = arith.constant 0 : index
    %31 = vector.load %arg4[%c4, %c2_29, %c0_30] : memref<5x5x4xf32, #tpu.memory_space<vmem>>, vector<1x1x4xf32>
    %32 = vector.broadcast %31 : vector<1x1x4xf32> to vector<16x16x4xf32>
    %33 = arith.mulf %30, %32 : vector<16x16x4xf32>
    %34 = arith.addf %29, %33 : vector<16x16x4xf32>
    %c0_31 = arith.constant 0 : index
    %c6 = arith.constant 6 : index
    %c0_32 = arith.constant 0 : index
    %35 = vector.load %arg6[%c0_31, %c6, %c0_32] : memref<20x26x4xf32, #tpu.memory_space<vmem>>, vector<20x16x4xf32>
    %36 = vector.extract_strided_slice %35 {offsets = [0, 0, 0], sizes = [16, 16, 4], strides = [1, 1, 1]} : vector<20x16x4xf32> to vector<16x16x4xf32>
    %c0_33 = arith.constant 0 : index
    %c0_34 = arith.constant 0 : index
    %c0_35 = arith.constant 0 : index
    %37 = vector.load %arg4[%c0_33, %c0_34, %c0_35] : memref<5x5x4xf32, #tpu.memory_space<vmem>>, vector<1x1x4xf32>
    %38 = vector.broadcast %37 : vector<1x1x4xf32> to vector<16x16x4xf32>
    %39 = arith.mulf %36, %38 : vector<16x16x4xf32>
    %40 = vector.extract_strided_slice %35 {offsets = [1, 0, 0], sizes = [16, 16, 4], strides = [1, 1, 1]} : vector<20x16x4xf32> to vector<16x16x4xf32>
    %c1_36 = arith.constant 1 : index
    %c0_37 = arith.constant 0 : index
    %c0_38 = arith.constant 0 : index
    %41 = vector.load %arg4[%c1_36, %c0_37, %c0_38] : memref<5x5x4xf32, #tpu.memory_space<vmem>>, vector<1x1x4xf32>
    %42 = vector.broadcast %41 : vector<1x1x4xf32> to vector<16x16x4xf32>
    %43 = arith.mulf %40, %42 : vector<16x16x4xf32>
    %44 = arith.addf %39, %43 : vector<16x16x4xf32>
    %45 = vector.extract_strided_slice %35 {offsets = [2, 0, 0], sizes = [16, 16, 4], strides = [1, 1, 1]} : vector<20x16x4xf32> to vector<16x16x4xf32>
    %c2_39 = arith.constant 2 : index
    %c0_40 = arith.constant 0 : index
    %c0_41 = arith.constant 0 : index
    %46 = vector.load %arg4[%c2_39, %c0_40, %c0_41] : memref<5x5x4xf32, #tpu.memory_space<vmem>>, vector<1x1x4xf32>
    %47 = vector.broadcast %46 : vector<1x1x4xf32> to vector<16x16x4xf32>
    %48 = arith.mulf %45, %47 : vector<16x16x4xf32>
    %49 = arith.addf %44, %48 : vector<16x16x4xf32>
    %50 = vector.extract_strided_slice %35 {offsets = [3, 0, 0], sizes = [16, 16, 4], strides = [1, 1, 1]} : vector<20x16x4xf32> to vector<16x16x4xf32>
    %c3_42 = arith.constant 3 : index
    %c0_43 = arith.constant 0 : index
    %c0_44 = arith.constant 0 : index
    %51 = vector.load %arg4[%c3_42, %c0_43, %c0_44] : memref<5x5x4xf32, #tpu.memory_space<vmem>>, vector<1x1x4xf32>
    %52 = vector.broadcast %51 : vector<1x1x4xf32> to vector<16x16x4xf32>
    %53 = arith.mulf %50, %52 : vector<16x16x4xf32>
    %54 = arith.addf %49, %53 : vector<16x16x4xf32>
    %55 = vector.extract_strided_slice %35 {offsets = [4, 0, 0], sizes = [16, 16, 4], strides = [1, 1, 1]} : vector<20x16x4xf32> to vector<16x16x4xf32>
    %c4_45 = arith.constant 4 : index
    %c0_46 = arith.constant 0 : index
    %c0_47 = arith.constant 0 : index
    %56 = vector.load %arg4[%c4_45, %c0_46, %c0_47] : memref<5x5x4xf32, #tpu.memory_space<vmem>>, vector<1x1x4xf32>
    %57 = vector.broadcast %56 : vector<1x1x4xf32> to vector<16x16x4xf32>
    %58 = arith.mulf %55, %57 : vector<16x16x4xf32>
    %59 = arith.addf %54, %58 : vector<16x16x4xf32>
    %60 = arith.addf %34, %59 : vector<16x16x4xf32>
    %c0_48 = arith.constant 0 : index
    %c7 = arith.constant 7 : index
    %c0_49 = arith.constant 0 : index
    %61 = vector.load %arg6[%c0_48, %c7, %c0_49] : memref<20x26x4xf32, #tpu.memory_space<vmem>>, vector<20x16x4xf32>
    %62 = vector.extract_strided_slice %61 {offsets = [0, 0, 0], sizes = [16, 16, 4], strides = [1, 1, 1]} : vector<20x16x4xf32> to vector<16x16x4xf32>
    %c0_50 = arith.constant 0 : index
    %c1_51 = arith.constant 1 : index
    %c0_52 = arith.constant 0 : index
    %63 = vector.load %arg4[%c0_50, %c1_51, %c0_52] : memref<5x5x4xf32, #tpu.memory_space<vmem>>, vector<1x1x4xf32>
    %64 = vector.broadcast %63 : vector<1x1x4xf32> to vector<16x16x4xf32>
    %65 = arith.mulf %62, %64 : vector<16x16x4xf32>
    %66 = vector.extract_strided_slice %61 {offsets = [1, 0, 0], sizes = [16, 16, 4], strides = [1, 1, 1]} : vector<20x16x4xf32> to vector<16x16x4xf32>
    %c1_53 = arith.constant 1 : index
    %c1_54 = arith.constant 1 : index
    %c0_55 = arith.constant 0 : index
    %67 = vector.load %arg4[%c1_53, %c1_54, %c0_55] : memref<5x5x4xf32, #tpu.memory_space<vmem>>, vector<1x1x4xf32>
    %68 = vector.broadcast %67 : vector<1x1x4xf32> to vector<16x16x4xf32>
    %69 = arith.mulf %66, %68 : vector<16x16x4xf32>
    %70 = arith.addf %65, %69 : vector<16x16x4xf32>
    %71 = vector.extract_strided_slice %61 {offsets = [2, 0, 0], sizes = [16, 16, 4], strides = [1, 1, 1]} : vector<20x16x4xf32> to vector<16x16x4xf32>
    %c2_56 = arith.constant 2 : index
    %c1_57 = arith.constant 1 : index
    %c0_58 = arith.constant 0 : index
    %72 = vector.load %arg4[%c2_56, %c1_57, %c0_58] : memref<5x5x4xf32, #tpu.memory_space<vmem>>, vector<1x1x4xf32>
    %73 = vector.broadcast %72 : vector<1x1x4xf32> to vector<16x16x4xf32>
    %74 = arith.mulf %71, %73 : vector<16x16x4xf32>
    %75 = arith.addf %70, %74 : vector<16x16x4xf32>
    %76 = vector.extract_strided_slice %61 {offsets = [3, 0, 0], sizes = [16, 16, 4], strides = [1, 1, 1]} : vector<20x16x4xf32> to vector<16x16x4xf32>
    %c3_59 = arith.constant 3 : index
    %c1_60 = arith.constant 1 : index
    %c0_61 = arith.constant 0 : index
    %77 = vector.load %arg4[%c3_59, %c1_60, %c0_61] : memref<5x5x4xf32, #tpu.memory_space<vmem>>, vector<1x1x4xf32>
    %78 = vector.broadcast %77 : vector<1x1x4xf32> to vector<16x16x4xf32>
    %79 = arith.mulf %76, %78 : vector<16x16x4xf32>
    %80 = arith.addf %75, %79 : vector<16x16x4xf32>
    %81 = vector.extract_strided_slice %61 {offsets = [4, 0, 0], sizes = [16, 16, 4], strides = [1, 1, 1]} : vector<20x16x4xf32> to vector<16x16x4xf32>
    %c4_62 = arith.constant 4 : index
    %c1_63 = arith.constant 1 : index
    %c0_64 = arith.constant 0 : index
    %82 = vector.load %arg4[%c4_62, %c1_63, %c0_64] : memref<5x5x4xf32, #tpu.memory_space<vmem>>, vector<1x1x4xf32>
    %83 = vector.broadcast %82 : vector<1x1x4xf32> to vector<16x16x4xf32>
    %84 = arith.mulf %81, %83 : vector<16x16x4xf32>
    %85 = arith.addf %80, %84 : vector<16x16x4xf32>
    %86 = arith.addf %60, %85 : vector<16x16x4xf32>
    %c0_65 = arith.constant 0 : index
    %c9 = arith.constant 9 : index
    %c0_66 = arith.constant 0 : index
    %87 = vector.load %arg6[%c0_65, %c9, %c0_66] : memref<20x26x4xf32, #tpu.memory_space<vmem>>, vector<20x16x4xf32>
    %88 = vector.extract_strided_slice %87 {offsets = [0, 0, 0], sizes = [16, 16, 4], strides = [1, 1, 1]} : vector<20x16x4xf32> to vector<16x16x4xf32>
    %c0_67 = arith.constant 0 : index
    %c3_68 = arith.constant 3 : index
    %c0_69 = arith.constant 0 : index
    %89 = vector.load %arg4[%c0_67, %c3_68, %c0_69] : memref<5x5x4xf32, #tpu.memory_space<vmem>>, vector<1x1x4xf32>
    %90 = vector.broadcast %89 : vector<1x1x4xf32> to vector<16x16x4xf32>
    %91 = arith.mulf %88, %90 : vector<16x16x4xf32>
    %92 = vector.extract_strided_slice %87 {offsets = [1, 0, 0], sizes = [16, 16, 4], strides = [1, 1, 1]} : vector<20x16x4xf32> to vector<16x16x4xf32>
    %c1_70 = arith.constant 1 : index
    %c3_71 = arith.constant 3 : index
    %c0_72 = arith.constant 0 : index
    %93 = vector.load %arg4[%c1_70, %c3_71, %c0_72] : memref<5x5x4xf32, #tpu.memory_space<vmem>>, vector<1x1x4xf32>
    %94 = vector.broadcast %93 : vector<1x1x4xf32> to vector<16x16x4xf32>
    %95 = arith.mulf %92, %94 : vector<16x16x4xf32>
    %96 = arith.addf %91, %95 : vector<16x16x4xf32>
    %97 = vector.extract_strided_slice %87 {offsets = [2, 0, 0], sizes = [16, 16, 4], strides = [1, 1, 1]} : vector<20x16x4xf32> to vector<16x16x4xf32>
    %c2_73 = arith.constant 2 : index
    %c3_74 = arith.constant 3 : index
    %c0_75 = arith.constant 0 : index
    %98 = vector.load %arg4[%c2_73, %c3_74, %c0_75] : memref<5x5x4xf32, #tpu.memory_space<vmem>>, vector<1x1x4xf32>
    %99 = vector.broadcast %98 : vector<1x1x4xf32> to vector<16x16x4xf32>
    %100 = arith.mulf %97, %99 : vector<16x16x4xf32>
    %101 = arith.addf %96, %100 : vector<16x16x4xf32>
    %102 = vector.extract_strided_slice %87 {offsets = [3, 0, 0], sizes = [16, 16, 4], strides = [1, 1, 1]} : vector<20x16x4xf32> to vector<16x16x4xf32>
    %c3_76 = arith.constant 3 : index
    %c3_77 = arith.constant 3 : index
    %c0_78 = arith.constant 0 : index
    %103 = vector.load %arg4[%c3_76, %c3_77, %c0_78] : memref<5x5x4xf32, #tpu.memory_space<vmem>>, vector<1x1x4xf32>
    %104 = vector.broadcast %103 : vector<1x1x4xf32> to vector<16x16x4xf32>
    %105 = arith.mulf %102, %104 : vector<16x16x4xf32>
    %106 = arith.addf %101, %105 : vector<16x16x4xf32>
    %107 = vector.extract_strided_slice %87 {offsets = [4, 0, 0], sizes = [16, 16, 4], strides = [1, 1, 1]} : vector<20x16x4xf32> to vector<16x16x4xf32>
    %c4_79 = arith.constant 4 : index
    %c3_80 = arith.constant 3 : index
    %c0_81 = arith.constant 0 : index
    %108 = vector.load %arg4[%c4_79, %c3_80, %c0_81] : memref<5x5x4xf32, #tpu.memory_space<vmem>>, vector<1x1x4xf32>
    %109 = vector.broadcast %108 : vector<1x1x4xf32> to vector<16x16x4xf32>
    %110 = arith.mulf %107, %109 : vector<16x16x4xf32>
    %111 = arith.addf %106, %110 : vector<16x16x4xf32>
    %112 = arith.addf %86, %111 : vector<16x16x4xf32>
    %c0_82 = arith.constant 0 : index
    %c10 = arith.constant 10 : index
    %c0_83 = arith.constant 0 : index
    %113 = vector.load %arg6[%c0_82, %c10, %c0_83] : memref<20x26x4xf32, #tpu.memory_space<vmem>>, vector<20x16x4xf32>
    %114 = vector.extract_strided_slice %113 {offsets = [0, 0, 0], sizes = [16, 16, 4], strides = [1, 1, 1]} : vector<20x16x4xf32> to vector<16x16x4xf32>
    %c0_84 = arith.constant 0 : index
    %c4_85 = arith.constant 4 : index
    %c0_86 = arith.constant 0 : index
    %115 = vector.load %arg4[%c0_84, %c4_85, %c0_86] : memref<5x5x4xf32, #tpu.memory_space<vmem>>, vector<1x1x4xf32>
    %116 = vector.broadcast %115 : vector<1x1x4xf32> to vector<16x16x4xf32>
    %117 = arith.mulf %114, %116 : vector<16x16x4xf32>
    %118 = vector.extract_strided_slice %113 {offsets = [1, 0, 0], sizes = [16, 16, 4], strides = [1, 1, 1]} : vector<20x16x4xf32> to vector<16x16x4xf32>
    %c1_87 = arith.constant 1 : index
    %c4_88 = arith.constant 4 : index
    %c0_89 = arith.constant 0 : index
    %119 = vector.load %arg4[%c1_87, %c4_88, %c0_89] : memref<5x5x4xf32, #tpu.memory_space<vmem>>, vector<1x1x4xf32>
    %120 = vector.broadcast %119 : vector<1x1x4xf32> to vector<16x16x4xf32>
    %121 = arith.mulf %118, %120 : vector<16x16x4xf32>
    %122 = arith.addf %117, %121 : vector<16x16x4xf32>
    %123 = vector.extract_strided_slice %113 {offsets = [2, 0, 0], sizes = [16, 16, 4], strides = [1, 1, 1]} : vector<20x16x4xf32> to vector<16x16x4xf32>
    %c2_90 = arith.constant 2 : index
    %c4_91 = arith.constant 4 : index
    %c0_92 = arith.constant 0 : index
    %124 = vector.load %arg4[%c2_90, %c4_91, %c0_92] : memref<5x5x4xf32, #tpu.memory_space<vmem>>, vector<1x1x4xf32>
    %125 = vector.broadcast %124 : vector<1x1x4xf32> to vector<16x16x4xf32>
    %126 = arith.mulf %123, %125 : vector<16x16x4xf32>
    %127 = arith.addf %122, %126 : vector<16x16x4xf32>
    %128 = vector.extract_strided_slice %113 {offsets = [3, 0, 0], sizes = [16, 16, 4], strides = [1, 1, 1]} : vector<20x16x4xf32> to vector<16x16x4xf32>
    %c3_93 = arith.constant 3 : index
    %c4_94 = arith.constant 4 : index
    %c0_95 = arith.constant 0 : index
    %129 = vector.load %arg4[%c3_93, %c4_94, %c0_95] : memref<5x5x4xf32, #tpu.memory_space<vmem>>, vector<1x1x4xf32>
    %130 = vector.broadcast %129 : vector<1x1x4xf32> to vector<16x16x4xf32>
    %131 = arith.mulf %128, %130 : vector<16x16x4xf32>
    %132 = arith.addf %127, %131 : vector<16x16x4xf32>
    %133 = vector.extract_strided_slice %113 {offsets = [4, 0, 0], sizes = [16, 16, 4], strides = [1, 1, 1]} : vector<20x16x4xf32> to vector<16x16x4xf32>
    %c4_96 = arith.constant 4 : index
    %c4_97 = arith.constant 4 : index
    %c0_98 = arith.constant 0 : index
    %134 = vector.load %arg4[%c4_96, %c4_97, %c0_98] : memref<5x5x4xf32, #tpu.memory_space<vmem>>, vector<1x1x4xf32>
    %135 = vector.broadcast %134 : vector<1x1x4xf32> to vector<16x16x4xf32>
    %136 = arith.mulf %133, %135 : vector<16x16x4xf32>
    %137 = arith.addf %132, %136 : vector<16x16x4xf32>
    %138 = arith.addf %112, %137 : vector<16x16x4xf32>
    %c0_99 = arith.constant 0 : index
    %c0_100 = arith.constant 0 : index
    %c0_101 = arith.constant 0 : index
    %c0_102 = arith.constant 0 : index
    %139 = vector.load %arg5[%c0_99, %c0_100, %c0_101, %c0_102] : memref<1x16x16x4xf32, #tpu.memory_space<vmem>>, vector<1x16x16x4xf32>
    %140 = vector.shape_cast %139 : vector<1x16x16x4xf32> to vector<16x16x4xf32>
    %141 = vector.shape_cast %138 : vector<16x16x4xf32> to vector<1x16x16x4xf32>
    tpu.vector_store %arg5[%c0_99, %c0_100, %c0_101, %c0_102], %141 {strides = array<i32>} : memref<1x16x16x4xf32, #tpu.memory_space<vmem>>, vector<1x16x16x4xf32>,
    return
  }
  func.func @transform_0(%arg0: i32, %arg1: i32, %arg2: memref<1xi32, #tpu.memory_space<smem>>) -> (i32, i32, i32, i32) {
    %c0_i32 = arith.constant 0 : i32
    %c0_i32_0 = arith.constant 0 : i32
    %c0_i32_1 = arith.constant 0 : i32
    return %arg1, %c0_i32, %c0_i32_0, %arg0 : i32, i32, i32, i32
  }
  func.func @transform_1(%arg0: i32, %arg1: i32, %arg2: memref<1xi32, #tpu.memory_space<smem>>) -> (i32, i32, i32) {
    %c0_i32 = arith.constant 0 : i32
    %c0_i32_0 = arith.constant 0 : i32
    %c0_i32_1 = arith.constant 0 : i32
    return %c0_i32, %c0_i32_0, %arg0 : i32, i32, i32
  }
  func.func @transform_2(%arg0: i32, %arg1: i32, %arg2: memref<1xi32, #tpu.memory_space<smem>>) -> (i32, i32, i32, i32) {
    %c0_i32 = arith.constant 0 : i32
    %c0_i32_0 = arith.constant 0 : i32
    %c0_i32_1 = arith.constant 0 : i32
    return %arg1, %c0_i32, %c0_i32_0, %arg0 : i32, i32, i32, i32
  }
}

</mosaic_0001>

<llo_original>
// kernel: tpu_custom_call.1
$region0: #{tpu_custom_call.1}
  #allocation0 [shape = 'u32[]', space=smem, size = 0x4, offset = 0x4, fixed_abs, tag = 'smem constant byte address 0x4 - core index']
  #allocation1 [shape = 'u32[144,128]{1,0:T(1,128)}', space=vmem, size = 0x12000, scoped, tag = 'internal scratch']
  #allocation2 [shape = 'f32[20,26,4]{2,1,0:T(8,128)}', space=vmem, size = 0x50000, scoped, tag = 'scratch operand']
  #allocation3 [shape = 'f32[16,16,4]{2,1,0:T(8,128)}', space=vmem, size = 0x20000, scoped, tag = 'scratch operand']
  #allocation4 [shape = 's32[1]{0}', space=sflag, size = 0x4, scoped, tag = 'scoped memory for tpu_custom_call.1']
  #allocation5 [shape = 's32[1]{0:T(128)S(6)}', space=smem, size = 0x200, scoped, tag = 'prefetched SMEM operand 0']
  %s0 = inlined_call_operand.<no memory space> [shape: s32[1], index: 0, kind: input, shape index: {}]
  %s1 = inlined_call_operand.vmem [shape: f32[2,16,16,4], index: 1, kind: input, shape index: {}]
  %s2 = inlined_call_operand.vmem [shape: f32[5,5,4], index: 2, kind: input, shape index: {}]
  %s3 = inlined_call_operand.vmem [shape: f32[2,16,16,4], index: 3, kind: output, shape index: {}]
  %s4 = sld [smem:[#allocation0]]
  $region41: #{tpu_custom_call.1} parent=0
    _
  %s6 = ssub.s32 1, %s4
  %s7 = scalar_select 0, %s6, %s4
  %8 = sst [smem:[#allocation5]] %s0
  loop: start=0, step=1, limit=4
  $region2: #{tpu_custom_call.1} parent=0 // loop_pre_header
    _
  $region3: #{tpu_custom_call.1} parent=0 // loop_header
    %s10 = sphi 0, %s14
    %p11 = scmp.ge.s32.totalorder %s10, 4
    %s17 = sphi 0, %s29
    %s18 = sphi 0, %s25
    %s19 = sphi 0, %s17
    %s20 = sphi 0, %s18
    %s21 = sphi 0, %s19
    %s22 = sphi 0, %s20
    %s34 = sphi 0, %s36
    %s37 = sphi 0, %s34
    %s38 = sphi 0, %s37
    %s54 = sphi 0, %s38
    %s60 = sphi 0, %s62
    %s63 = sphi 0, %s60
    %s64 = sphi 0, %s63
    %s80 = sphi 0, %s64
    %s88 = sphi 0, %s90
    %s91 = sphi 0, %s88
    %s92 = sphi 0, %s91
    %s108 = sphi 0, %s92
  $region4: #{tpu_custom_call.1} parent=0 // loop_header_branch
    %13 = sbr.rel (%p11) target = $region8
  $region5: #{tpu_custom_call.1} parent=0 // loop_body
    %s15 = ssub.s32 %s10, 1
    %s16 = ssub.s32 %s10, 2
    %s23 = sadd.s32 1, %s18
    %p24 = scmp.ge.s32.totalorder %s23, 2
    %s25 = scalar_select %p24, 0, %s23
    %s26 = sadd.s32 1, %s17
    %s27 = scalar_select %p24, %s26, %s17
    %p28 = scmp.ge.s32.totalorder %s27, 1
    %s29 = scalar_select %p28, 0, %s27
    %s30 = ssub.s32 %s18, %s25
    %s31 = ssub.s32 %s17, %s29
    %s32 = sor.u32 %s30, %s31
    %p33 = scmp.eq.s32.totalorder %s32, 0
    %s35 = sadd.s32 %s34, 1
    %s36 = scalar_select %p33, %s34, %s35
    %p39 = pneg %p33
    %p40 = scmp.eq.s32.totalorder %s10, 1
    %p41 = por %p39, %p40
    %p42 = scmp.ne.s32.totalorder %s34, %s37
    %p43 = scmp.eq.s32.totalorder %s10, 0
    %p44 = por %p42, %p43
    %p45 = scmp.ne.s32.totalorder %s34, %s37
    %p46 = scmp.eq.s32.totalorder %s15, 1
    %p47 = por %p45, %p46
    %p48 = scmp.ne.s32.totalorder %s37, %s38
    %p49 = scmp.eq.s32.totalorder %s15, 0
    %p50 = por %p48, %p49
    %p51 = scmp.ne.s32.totalorder %s37, %s38
    %p52 = scmp.eq.s32.totalorder %s16, 1
    %p53 = por %p51, %p52
    %p55 = scmp.ne.s32.totalorder %s38, %s54
    %p56 = scmp.eq.s32.totalorder %s16, 0
    %p57 = por %p55, %p56
    %s58 = ssub.s32 %s17, %s29
    %p59 = scmp.eq.s32.totalorder %s58, 0
    %s61 = sadd.s32 %s60, 1
    %s62 = scalar_select %p59, %s60, %s61
    %p65 = pneg %p59
    %p66 = scmp.eq.s32.totalorder %s10, 1
    %p67 = por %p65, %p66
    %p68 = scmp.ne.s32.totalorder %s60, %s63
    %p69 = scmp.eq.s32.totalorder %s10, 0
    %p70 = por %p68, %p69
    %p71 = scmp.ne.s32.totalorder %s60, %s63
    %p72 = scmp.eq.s32.totalorder %s15, 1
    %p73 = por %p71, %p72
    %p74 = scmp.ne.s32.totalorder %s63, %s64
    %p75 = scmp.eq.s32.totalorder %s15, 0
    %p76 = por %p74, %p75
    %p77 = scmp.ne.s32.totalorder %s63, %s64
    %p78 = scmp.eq.s32.totalorder %s16, 1
    %p79 = por %p77, %p78
    %p81 = scmp.ne.s32.totalorder %s64, %s80
    %p82 = scmp.eq.s32.totalorder %s16, 0
    %p83 = por %p81, %p82
    %s84 = ssub.s32 %s18, %s25
    %s85 = ssub.s32 %s17, %s29
    %s86 = sor.u32 %s84, %s85
    %p87 = scmp.eq.s32.totalorder %s86, 0
    %s89 = sadd.s32 %s88, 1
    %s90 = scalar_select %p87, %s88, %s89
    %p93 = pneg %p87
    %p94 = scmp.eq.s32.totalorder %s10, 1
    %p95 = por %p93, %p94
    %p96 = scmp.ne.s32.totalorder %s88, %s91
    %p97 = scmp.eq.s32.totalorder %s10, 0
    %p98 = por %p96, %p97
    %p99 = scmp.ne.s32.totalorder %s88, %s91
    %p100 = scmp.eq.s32.totalorder %s15, 1
    %p101 = por %p99, %p100
    %p102 = scmp.ne.s32.totalorder %s91, %s92
    %p103 = scmp.eq.s32.totalorder %s15, 0
    %p104 = por %p102, %p103
    %p105 = scmp.ne.s32.totalorder %s91, %s92
    %p106 = scmp.eq.s32.totalorder %s16, 1
    %p107 = por %p105, %p106
    %p109 = scmp.ne.s32.totalorder %s92, %s108
    %p110 = scmp.eq.s32.totalorder %s16, 0
    %p111 = por %p109, %p110
    %p112 = scmp.le.s32.totalorder 1, %s10
    %p113 = scmp.lt.s32.totalorder %s10, 3
    %p114 = pnand %p112, %p113
    %p115 = pneg %p114
    // Predicated region
    $region9: #{tpu_custom_call.1} parent=5 // pred_check
      _
    $region10: #{tpu_custom_call.1} parent=5 // pred_check_branch
      %117 = sbr.rel (%p114) target = $region12
    $region11: #{tpu_custom_call.1} parent=5 // pred_region
      %s118 = ssub.s32 %s10, 1
      // Predicated region
      $region13: #{tpu_custom_call.1} parent=11 // pred_check
        %p119 = pneg %p76
      $region14: #{tpu_custom_call.1} parent=11 // pred_check_branch
        %121 = sbr.rel (%p119) target = $region16
      $region15: #{tpu_custom_call.1} parent=11 // pred_region
        %p122 = scmp.lt.s32.totalorder %s19, 0
        %s123 = scalar_select %p122, %s19, 0
        %s124 = smul.addr %s123, 8
        %s125 = scalar_lea.vmem %s2, %s124
      $region16: #{tpu_custom_call.1} parent=11 // pred_fallthru
        _
    $region12: #{tpu_custom_call.1} parent=5 // pred_fallthru
      _
    %p126 = scmp.lt.s32.totalorder %s10, 2
    // Predicated region
    $region17: #{tpu_custom_call.1} parent=5 // pred_check
      %p127 = pneg %p126
    $region18: #{tpu_custom_call.1} parent=5 // pred_check_branch
      %129 = sbr.rel (%p127) target = $region20
    $region19: #{tpu_custom_call.1} parent=5 // pred_region
      // Predicated region
      $region21: #{tpu_custom_call.1} parent=19 // pred_check
        %p130 = pneg %p44
      $region22: #{tpu_custom_call.1} parent=19 // pred_check_branch
        %132 = sbr.rel (%p130) target = $region24
      $region23: #{tpu_custom_call.1} parent=19 // pred_region
        %p133 = scmp.lt.s32.totalorder %s18, 1
        %s134 = scalar_select %p133, %s18, 1
        %p135 = scmp.lt.s32.totalorder %s17, 0
        %s136 = scalar_select %p135, %s17, 0
        %s137 = smul.addr %s134, 32
        %s138 = sadd.s32 %s136, %s137
        %s139 = smul.addr %s138, 8
        %s140 = scalar_lea.vmem %s1, %s139
      $region24: #{tpu_custom_call.1} parent=19 // pred_fallthru
        _
    $region20: #{tpu_custom_call.1} parent=5 // pred_fallthru
      _
    %p141 = scmp.le.s32.totalorder 1, %s10
    %p142 = scmp.lt.s32.totalorder %s10, 3
    %p143 = pnand %p141, %p142
    %p144 = pneg %p143
    // Predicated region
    $region25: #{tpu_custom_call.1} parent=5 // pred_check
      _
    $region26: #{tpu_custom_call.1} parent=5 // pred_check_branch
      %146 = sbr.rel (%p143) target = $region28
    $region27: #{tpu_custom_call.1} parent=5 // pred_region
      %s147 = ssub.s32 %s10, 1
      %p148 = scmp.lt.s32.totalorder %s20, 1
      %s149 = scalar_select %p148, %s20, 1
      %p150 = scmp.lt.s32.totalorder %s19, 0
      %s151 = scalar_select %p150, %s19, 0
      %s152 = smul.addr %s149, 32
      %s153 = sadd.s32 %s151, %s152
      %s154 = smul.addr %s153, 8
      %s155 = scalar_lea.vmem %s1, %s154
      %p156 = pneg %p50
      %p157 = pneg %p47
      %p158 = scmp.lt.s32.totalorder %s19, 0
      %s159 = scalar_select %p158, %s19, 0
      %s160 = smul.addr %s159, 8
      %s161 = scalar_lea.vmem %s2, %s160
      %p162 = pneg %p76
      %p163 = pneg %p73
      %p164 = pneg %p104
      %p165 = pneg %p101
      %p166 = scmp.lt.s32.totalorder %s20, 1
      %s167 = scalar_select %p166, %s20, 1
      %p168 = scmp.lt.s32.totalorder %s19, 0
      %s169 = scalar_select %p168, %s19, 0
      %s170 = smul.addr %s167, 32
      %s171 = sadd.s32 %s169, %s170
      %s172 = smul.addr %s171, 8
      %s173 = scalar_lea.vmem %s3, %s172
      %p174 = scmp.lt.s32.totalorder %s20, 1
      %s175 = scalar_select %p174, %s20, 1
      %p176 = scmp.lt.s32.totalorder %s19, 0
      %s177 = scalar_select %p176, %s19, 0
      %s178 = smul.addr %s175, 32
      %s179 = sadd.s32 %s177, %s178
      %s180 = smul.addr %s179, 8
      %s181 = scalar_lea.vmem %s1, %s180
      %p182 = scmp.lt.s32.totalorder %s19, 0
      %s183 = scalar_select %p182, %s19, 0
      %s184 = smul.addr %s183, 8
      %s185 = scalar_lea.vmem %s2, %s184
      %p186 = scmp.lt.s32.totalorder %s20, 1
      %s187 = scalar_select %p186, %s20, 1
      %p188 = scmp.lt.s32.totalorder %s19, 0
      %s189 = scalar_select %p188, %s19, 0
      %s190 = smul.addr %s187, 32
      %s191 = sadd.s32 %s189, %s190
      %s192 = smul.addr %s191, 8
      %s193 = scalar_lea.vmem %s3, %s192
      %vm194 = vcmask 31744
      %195 = vst.msk [vmem:[#allocation2] sm:$0xff] %vm194, 0.0
      %196 = vst.msk [vmem:[#allocation2 + $0x8] sm:$0xff] %vm194, 0.0
      %197 = vst.msk [vmem:[#allocation2 + $0x10] sm:$0xff] %vm194, 0.0
      %vm198 = vcmask 25600
      %199 = vst.msk [vmem:[#allocation2 + $0x18] sm:$0x3] %vm198, 0.0
      %200 = vst.msk [vmem:[#allocation2 + $0x20] sm:$0xff] %vm194, 0.0
      %201 = vst.msk [vmem:[#allocation2 + $0x28] sm:$0xff] %vm194, 0.0
      %202 = vst.msk [vmem:[#allocation2 + $0x30] sm:$0xff] %vm194, 0.0
      %203 = vst.msk [vmem:[#allocation2 + $0x38] sm:$0x3] %vm198, 0.0
      %s204 = scalar_lea.vmem [#allocation2], 576
      %205 = vst.msk [vmem:[%s204] sm:$0xff] %vm194, 0.0
      %206 = vst.msk [vmem:[%s204 + $0x8] sm:$0xff] %vm194, 0.0
      %207 = vst.msk [vmem:[%s204 + $0x10] sm:$0xff] %vm194, 0.0
      %208 = vst.msk [vmem:[%s204 + $0x18] sm:$0x3] %vm198, 0.0
      %209 = vst.msk [vmem:[%s204 + $0x20] sm:$0xff] %vm194, 0.0
      %210 = vst.msk [vmem:[%s204 + $0x28] sm:$0xff] %vm194, 0.0
      %211 = vst.msk [vmem:[%s204 + $0x30] sm:$0xff] %vm194, 0.0
      %212 = vst.msk [vmem:[%s204 + $0x38] sm:$0x3] %vm198, 0.0
      %213 = vst.msk [vmem:[#allocation2] sm:$0xff] %vm194, 0.0
      %214 = vst.msk [vmem:[#allocation2 + $0x20] sm:$0xff] %vm194, 0.0
      %215 = vst.msk [vmem:[#allocation2 + $0x40] sm:$0xff] %vm194, 0.0
      %216 = vst.msk [vmem:[#allocation2 + $0x60] sm:$0xff] %vm194, 0.0
      %217 = vst.msk [vmem:[#allocation2 + $0x80] sm:$0xff] %vm194, 0.0
      %218 = vst.msk [vmem:[#allocation2 + $0xa0] sm:$0xff] %vm194, 0.0
      %219 = vst.msk [vmem:[#allocation2 + $0xc0] sm:$0xff] %vm194, 0.0
      %220 = vst.msk [vmem:[#allocation2 + $0xe0] sm:$0xff] %vm194, 0.0
      %221 = vst.msk [vmem:[#allocation2 + $0x100] sm:$0xff] %vm194, 0.0
      %222 = vst.msk [vmem:[#allocation2 + $0x120] sm:$0xff] %vm194, 0.0
      %223 = vst.msk [vmem:[#allocation2 + $0x140] sm:$0xff] %vm194, 0.0
      %224 = vst.msk [vmem:[#allocation2 + $0x160] sm:$0xff] %vm194, 0.0
      %225 = vst.msk [vmem:[#allocation2 + $0x180] sm:$0xff] %vm194, 0.0
      %226 = vst.msk [vmem:[#allocation2 + $0x1a0] sm:$0xff] %vm194, 0.0
      %227 = vst.msk [vmem:[#allocation2 + $0x1c0] sm:$0xff] %vm194, 0.0
      %228 = vst.msk [vmem:[#allocation2 + $0x1e0] sm:$0xff] %vm194, 0.0
      %229 = vst.msk [vmem:[#allocation2 + $0x200] sm:$0xff] %vm194, 0.0
      %230 = vst.msk [vmem:[#allocation2 + $0x220] sm:$0xff] %vm194, 0.0
      %231 = vst.msk [vmem:[#allocation2 + $0x240] sm:$0xff] %vm194, 0.0
      %232 = vst.msk [vmem:[#allocation2 + $0x260] sm:$0xff] %vm194, 0.0
      %233 = vst.msk [vmem:[#allocation2 + $0x18] sm:$0x3] %vm198, 0.0
      %234 = vst.msk [vmem:[#allocation2 + $0x38] sm:$0x3] %vm198, 0.0
      %235 = vst.msk [vmem:[#allocation2 + $0x58] sm:$0x3] %vm198, 0.0
      %236 = vst.msk [vmem:[#allocation2 + $0x78] sm:$0x3] %vm198, 0.0
      %237 = vst.msk [vmem:[#allocation2 + $0x98] sm:$0x3] %vm198, 0.0
      %238 = vst.msk [vmem:[#allocation2 + $0xb8] sm:$0x3] %vm198, 0.0
      %239 = vst.msk [vmem:[#allocation2 + $0xd8] sm:$0x3] %vm198, 0.0
      %240 = vst.msk [vmem:[#allocation2 + $0xf8] sm:$0x3] %vm198, 0.0
      %241 = vst.msk [vmem:[#allocation2 + $0x118] sm:$0x3] %vm198, 0.0
      %242 = vst.msk [vmem:[#allocation2 + $0x138] sm:$0x3] %vm198, 0.0
      %243 = vst.msk [vmem:[#allocation2 + $0x158] sm:$0x3] %vm198, 0.0
      %244 = vst.msk [vmem:[#allocation2 + $0x178] sm:$0x3] %vm198, 0.0
      %245 = vst.msk [vmem:[#allocation2 + $0x198] sm:$0x3] %vm198, 0.0
      %246 = vst.msk [vmem:[#allocation2 + $0x1b8] sm:$0x3] %vm198, 0.0
      %247 = vst.msk [vmem:[#allocation2 + $0x1d8] sm:$0x3] %vm198, 0.0
      %248 = vst.msk [vmem:[#allocation2 + $0x1f8] sm:$0x3] %vm198, 0.0
      %249 = vst.msk [vmem:[#allocation2 + $0x218] sm:$0x3] %vm198, 0.0
      %250 = vst.msk [vmem:[#allocation2 + $0x238] sm:$0x3] %vm198, 0.0
      %251 = vst.msk [vmem:[#allocation2 + $0x258] sm:$0x3] %vm198, 0.0
      %252 = vst.msk [vmem:[#allocation2 + $0x278] sm:$0x3] %vm198, 0.0
      %v253 = vld [vmem:[%s181] sm:$0xff]
      %v254 = vld [vmem:[%s181 + $0x8] sm:$0xff]
      %v255 = vld [vmem:[%s181 + $0x10] sm:$0xff]
      %v256 = vld [vmem:[%s181 + $0x18] sm:$0xff]
      %v257 = vld [vmem:[%s181 + $0x20] sm:$0xff]
      %v258 = vld [vmem:[%s181 + $0x28] sm:$0xff]
      %v259 = vld [vmem:[%s181 + $0x30] sm:$0xff]
      %v260 = vld [vmem:[%s181 + $0x38] sm:$0xff]
      %v261 = vld [vmem:[%s181 + $0x40] sm:$0xff]
      %v262 = vld [vmem:[%s181 + $0x48] sm:$0xff]
      %v263 = vld [vmem:[%s181 + $0x50] sm:$0xff]
      %v264 = vld [vmem:[%s181 + $0x58] sm:$0xff]
      %v265 = vld [vmem:[%s181 + $0x60] sm:$0xff]
      %v266 = vld [vmem:[%s181 + $0x68] sm:$0xff]
      %v267 = vld [vmem:[%s181 + $0x70] sm:$0xff]
      %v268 = vld [vmem:[%s181 + $0x78] sm:$0xff]
      %v269 = vld [vmem:[%s181 + $0x80] sm:$0xff]
      %v270 = vld [vmem:[%s181 + $0x88] sm:$0xff]
      %v271 = vld [vmem:[%s181 + $0x90] sm:$0xff]
      %v272 = vld [vmem:[%s181 + $0x98] sm:$0xff]
      %v273 = vld [vmem:[%s181 + $0xa0] sm:$0xff]
      %v274 = vld [vmem:[%s181 + $0xa8] sm:$0xff]
      %v275 = vld [vmem:[%s181 + $0xb0] sm:$0xff]
      %v276 = vld [vmem:[%s181 + $0xb8] sm:$0xff]
      %v277 = vld [vmem:[%s181 + $0xc0] sm:$0xff]
      %v278 = vld [vmem:[%s181 + $0xc8] sm:$0xff]
      %v279 = vld [vmem:[%s181 + $0xd0] sm:$0xff]
      %v280 = vld [vmem:[%s181 + $0xd8] sm:$0xff]
      %v281 = vld [vmem:[%s181 + $0xe0] sm:$0xff]
      %v282 = vld [vmem:[%s181 + $0xe8] sm:$0xff]
      %v283 = vld [vmem:[%s181 + $0xf0] sm:$0xff]
      %v284 = vld [vmem:[%s181 + $0xf8] sm:$0xff]
      %s285 = scalar_lea.vmem [#allocation2], 64
      %286 = vst.msk [vmem:[%s285 + $0x8] sm:$0xff] %vm194, %v253
      %287 = vst.msk [vmem:[%s285 + $0x10] sm:$0xff] %vm194, %v254
      %288 = vst.msk [vmem:[%s285 + $0x28] sm:$0xff] %vm194, %v255
      %289 = vst.msk [vmem:[%s285 + $0x30] sm:$0xff] %vm194, %v256
      %290 = vst.msk [vmem:[%s285 + $0x48] sm:$0xff] %vm194, %v257
      %291 = vst.msk [vmem:[%s285 + $0x50] sm:$0xff] %vm194, %v258
      %292 = vst.msk [vmem:[%s285 + $0x68] sm:$0xff] %vm194, %v259
      %293 = vst.msk [vmem:[%s285 + $0x70] sm:$0xff] %vm194, %v260
      %294 = vst.msk [vmem:[%s285 + $0x88] sm:$0xff] %vm194, %v261
      %295 = vst.msk [vmem:[%s285 + $0x90] sm:$0xff] %vm194, %v262
      %296 = vst.msk [vmem:[%s285 + $0xa8] sm:$0xff] %vm194, %v263
      %297 = vst.msk [vmem:[%s285 + $0xb0] sm:$0xff] %vm194, %v264
      %298 = vst.msk [vmem:[%s285 + $0xc8] sm:$0xff] %vm194, %v265
      %299 = vst.msk [vmem:[%s285 + $0xd0] sm:$0xff] %vm194, %v266
      %300 = vst.msk [vmem:[%s285 + $0xe8] sm:$0xff] %vm194, %v267
      %301 = vst.msk [vmem:[%s285 + $0xf0] sm:$0xff] %vm194, %v268
      %302 = vst.msk [vmem:[%s285 + $0x108] sm:$0xff] %vm194, %v269
      %303 = vst.msk [vmem:[%s285 + $0x110] sm:$0xff] %vm194, %v270
      %304 = vst.msk [vmem:[%s285 + $0x128] sm:$0xff] %vm194, %v271
      %305 = vst.msk [vmem:[%s285 + $0x130] sm:$0xff] %vm194, %v272
      %306 = vst.msk [vmem:[%s285 + $0x148] sm:$0xff] %vm194, %v273
      %307 = vst.msk [vmem:[%s285 + $0x150] sm:$0xff] %vm194, %v274
      %308 = vst.msk [vmem:[%s285 + $0x168] sm:$0xff] %vm194, %v275
      %309 = vst.msk [vmem:[%s285 + $0x170] sm:$0xff] %vm194, %v276
      %310 = vst.msk [vmem:[%s285 + $0x188] sm:$0xff] %vm194, %v277
      %311 = vst.msk [vmem:[%s285 + $0x190] sm:$0xff] %vm194, %v278
      %312 = vst.msk [vmem:[%s285 + $0x1a8] sm:$0xff] %vm194, %v279
      %313 = vst.msk [vmem:[%s285 + $0x1b0] sm:$0xff] %vm194, %v280
      %314 = vst.msk [vmem:[%s285 + $0x1c8] sm:$0xff] %vm194, %v281
      %315 = vst.msk [vmem:[%s285 + $0x1d0] sm:$0xff] %vm194, %v282
      %316 = vst.msk [vmem:[%s285 + $0x1e8] sm:$0xff] %vm194, %v283
      %317 = vst.msk [vmem:[%s285 + $0x1f0] sm:$0xff] %vm194, %v284
      %v318 = vld [vmem:[#allocation2 + $0x8] sm:$0xff]
      %v319 = vld [vmem:[#allocation2 + $0x10] sm:$0xff]
      %v320 = vld [vmem:[#allocation2 + $0x28] sm:$0xff]
      %v321 = vld [vmem:[#allocation2 + $0x30] sm:$0xff]
      %v322 = vld [vmem:[#allocation2 + $0x48] sm:$0xff]
      %v323 = vld [vmem:[#allocation2 + $0x50] sm:$0xff]
      %v324 = vld [vmem:[#allocation2 + $0x68] sm:$0xff]
      %v325 = vld [vmem:[#allocation2 + $0x70] sm:$0xff]
      %v326 = vld [vmem:[#allocation2 + $0x88] sm:$0xff]
      %v327 = vld [vmem:[#allocation2 + $0x90] sm:$0xff]
      %v328 = vld [vmem:[#allocation2 + $0xa8] sm:$0xff]
      %v329 = vld [vmem:[#allocation2 + $0xb0] sm:$0xff]
      %v330 = vld [vmem:[#allocation2 + $0xc8] sm:$0xff]
      %v331 = vld [vmem:[#allocation2 + $0xd0] sm:$0xff]
      %v332 = vld [vmem:[#allocation2 + $0xe8] sm:$0xff]
      %v333 = vld [vmem:[#allocation2 + $0xf0] sm:$0xff]
      %v334 = vld [vmem:[#allocation2 + $0x108] sm:$0xff]
      %v335 = vld [vmem:[#allocation2 + $0x110] sm:$0xff]
      %v336 = vld [vmem:[#allocation2 + $0x128] sm:$0xff]
      %v337 = vld [vmem:[#allocation2 + $0x130] sm:$0xff]
      %v338 = vld [vmem:[#allocation2 + $0x148] sm:$0xff]
      %v339 = vld [vmem:[#allocation2 + $0x150] sm:$0xff]
      %v340 = vld [vmem:[#allocation2 + $0x168] sm:$0xff]
      %v341 = vld [vmem:[#allocation2 + $0x170] sm:$0xff]
      %v342 = vld [vmem:[#allocation2 + $0x188] sm:$0xff]
      %v343 = vld [vmem:[#allocation2 + $0x190] sm:$0xff]
      %v344 = vld [vmem:[#allocation2 + $0x1a8] sm:$0xff]
      %v345 = vld [vmem:[#allocation2 + $0x1b0] sm:$0xff]
      %v346 = vld [vmem:[#allocation2 + $0x1c8] sm:$0xff]
      %v347 = vld [vmem:[#allocation2 + $0x1d0] sm:$0xff]
      %v348 = vld [vmem:[#allocation2 + $0x1e8] sm:$0xff]
      %v349 = vld [vmem:[#allocation2 + $0x1f0] sm:$0xff]
      %v350 = vld [vmem:[#allocation2 + $0x208] sm:$0xff]
      %v351 = vld [vmem:[#allocation2 + $0x210] sm:$0xff]
      %v352 = vld [vmem:[#allocation2 + $0x228] sm:$0xff]
      %v353 = vld [vmem:[#allocation2 + $0x230] sm:$0xff]
      %v354 = vld [vmem:[#allocation2 + $0x248] sm:$0xff]
      %v355 = vld [vmem:[#allocation2 + $0x250] sm:$0xff]
      %v356 = vld [vmem:[#allocation2 + $0x268] sm:$0xff]
      %v357 = vld [vmem:[#allocation2 + $0x270] sm:$0xff]
      %v358 = vld [vmem:[%s185 + $0x2] sm:$0x1]
      %v359 = vlaneseq
      %v360 = vshrl.u32 %v359, 7
      %v361 = vsub.s32 0, %v360
      %v362 = vrot.slane %v358, %v361
      %v363 = vmul.f32 %v318, %v362
      %v364 = vmul.f32 %v319, %v362
      %v365 = vmul.f32 %v320, %v362
      %v366 = vmul.f32 %v321, %v362
      %v367 = vmul.f32 %v322, %v362
      %v368 = vmul.f32 %v323, %v362
      %v369 = vmul.f32 %v324, %v362
      %v370 = vmul.f32 %v325, %v362
      %v371 = vmul.f32 %v326, %v362
      %v372 = vmul.f32 %v327, %v362
      %v373 = vmul.f32 %v328, %v362
      %v374 = vmul.f32 %v329, %v362
      %v375 = vmul.f32 %v330, %v362
      %v376 = vmul.f32 %v331, %v362
      %v377 = vmul.f32 %v332, %v362
      %v378 = vmul.f32 %v333, %v362
      %v379 = vmul.f32 %v334, %v362
      %v380 = vmul.f32 %v335, %v362
      %v381 = vmul.f32 %v336, %v362
      %v382 = vmul.f32 %v337, %v362
      %v383 = vmul.f32 %v338, %v362
      %v384 = vmul.f32 %v339, %v362
      %v385 = vmul.f32 %v340, %v362
      %v386 = vmul.f32 %v341, %v362
      %v387 = vmul.f32 %v342, %v362
      %v388 = vmul.f32 %v343, %v362
      %v389 = vmul.f32 %v344, %v362
      %v390 = vmul.f32 %v345, %v362
      %v391 = vmul.f32 %v346, %v362
      %v392 = vmul.f32 %v347, %v362
      %v393 = vmul.f32 %v348, %v362
      %v394 = vmul.f32 %v349, %v362
      %s395 = scalar_lea.vmem %s185, 8
      %v396 = vld [vmem:[%s395 + $0x2] sm:$0x1]
      %v397 = vlaneseq
      %v398 = vshrl.u32 %v397, 7
      %v399 = vsub.s32 0, %v398
      %v400 = vrot.slane %v396, %v399
      %v401 = vmul.f32 %v320, %v400
      %v402 = vmul.f32 %v321, %v400
      %v403 = vmul.f32 %v322, %v400
      %v404 = vmul.f32 %v323, %v400
      %v405 = vmul.f32 %v324, %v400
      %v406 = vmul.f32 %v325, %v400
      %v407 = vmul.f32 %v326, %v400
      %v408 = vmul.f32 %v327, %v400
      %v409 = vmul.f32 %v328, %v400
      %v410 = vmul.f32 %v329, %v400
      %v411 = vmul.f32 %v330, %v400
      %v412 = vmul.f32 %v331, %v400
      %v413 = vmul.f32 %v332, %v400
      %v414 = vmul.f32 %v333, %v400
      %v415 = vmul.f32 %v334, %v400
      %v416 = vmul.f32 %v335, %v400
      %v417 = vmul.f32 %v336, %v400
      %v418 = vmul.f32 %v337, %v400
      %v419 = vmul.f32 %v338, %v400
      %v420 = vmul.f32 %v339, %v400
      %v421 = vmul.f32 %v340, %v400
      %v422 = vmul.f32 %v341, %v400
      %v423 = vmul.f32 %v342, %v400
      %v424 = vmul.f32 %v343, %v400
      %v425 = vmul.f32 %v344, %v400
      %v426 = vmul.f32 %v345, %v400
      %v427 = vmul.f32 %v346, %v400
      %v428 = vmul.f32 %v347, %v400
      %v429 = vmul.f32 %v348, %v400
      %v430 = vmul.f32 %v349, %v400
      %v431 = vmul.f32 %v350, %v400
      %v432 = vmul.f32 %v351, %v400
      %v433 = vadd.f32 %v363, %v401
      %v434 = vadd.f32 %v364, %v402
      %v435 = vadd.f32 %v365, %v403
      %v436 = vadd.f32 %v366, %v404
      %v437 = vadd.f32 %v367, %v405
      %v438 = vadd.f32 %v368, %v406
      %v439 = vadd.f32 %v369, %v407
      %v440 = vadd.f32 %v370, %v408
      %v441 = vadd.f32 %v371, %v409
      %v442 = vadd.f32 %v372, %v410
      %v443 = vadd.f32 %v373, %v411
      %v444 = vadd.f32 %v374, %v412
      %v445 = vadd.f32 %v375, %v413
      %v446 = vadd.f32 %v376, %v414
      %v447 = vadd.f32 %v377, %v415
      %v448 = vadd.f32 %v378, %v416
      %v449 = vadd.f32 %v379, %v417
      %v450 = vadd.f32 %v380, %v418
      %v451 = vadd.f32 %v381, %v419
      %v452 = vadd.f32 %v382, %v420
      %v453 = vadd.f32 %v383, %v421
      %v454 = vadd.f32 %v384, %v422
      %v455 = vadd.f32 %v385, %v423
      %v456 = vadd.f32 %v386, %v424
      %v457 = vadd.f32 %v387, %v425
      %v458 = vadd.f32 %v388, %v426
      %v459 = vadd.f32 %v389, %v427
      %v460 = vadd.f32 %v390, %v428
      %v461 = vadd.f32 %v391, %v429
      %v462 = vadd.f32 %v392, %v430
      %v463 = vadd.f32 %v393, %v431
      %v464 = vadd.f32 %v394, %v432
      %s465 = scalar_lea.vmem %s185, 16
      %v466 = vld [vmem:[%s465 + $0x2] sm:$0x1]
      %v467 = vlaneseq
      %v468 = vshrl.u32 %v467, 7
      %v469 = vsub.s32 0, %v468
      %v470 = vrot.slane %v466, %v469
      %v471 = vmul.f32 %v322, %v470
      %v472 = vmul.f32 %v323, %v470
      %v473 = vmul.f32 %v324, %v470
      %v474 = vmul.f32 %v325, %v470
      %v475 = vmul.f32 %v326, %v470
      %v476 = vmul.f32 %v327, %v470
      %v477 = vmul.f32 %v328, %v470
      %v478 = vmul.f32 %v329, %v470
      %v479 = vmul.f32 %v330, %v470
      %v480 = vmul.f32 %v331, %v470
      %v481 = vmul.f32 %v332, %v470
      %v482 = vmul.f32 %v333, %v470
      %v483 = vmul.f32 %v334, %v470
      %v484 = vmul.f32 %v335, %v470
      %v485 = vmul.f32 %v336, %v470
      %v486 = vmul.f32 %v337, %v470
      %v487 = vmul.f32 %v338, %v470
      %v488 = vmul.f32 %v339, %v470
      %v489 = vmul.f32 %v340, %v470
      %v490 = vmul.f32 %v341, %v470
      %v491 = vmul.f32 %v342, %v470
      %v492 = vmul.f32 %v343, %v470
      %v493 = vmul.f32 %v344, %v470
      %v494 = vmul.f32 %v345, %v470
      %v495 = vmul.f32 %v346, %v470
      %v496 = vmul.f32 %v347, %v470
      %v497 = vmul.f32 %v348, %v470
      %v498 = vmul.f32 %v349, %v470
      %v499 = vmul.f32 %v350, %v470
      %v500 = vmul.f32 %v351, %v470
      %v501 = vmul.f32 %v352, %v470
      %v502 = vmul.f32 %v353, %v470
      %v503 = vadd.f32 %v433, %v471
      %v504 = vadd.f32 %v434, %v472
      %v505 = vadd.f32 %v435, %v473
      %v506 = vadd.f32 %v436, %v474
      %v507 = vadd.f32 %v437, %v475
      %v508 = vadd.f32 %v438, %v476
      %v509 = vadd.f32 %v439, %v477
      %v510 = vadd.f32 %v440, %v478
      %v511 = vadd.f32 %v441, %v479
      %v512 = vadd.f32 %v442, %v480
      %v513 = vadd.f32 %v443, %v481
      %v514 = vadd.f32 %v444, %v482
      %v515 = vadd.f32 %v445, %v483
      %v516 = vadd.f32 %v446, %v484
      %v517 = vadd.f32 %v447, %v485
      %v518 = vadd.f32 %v448, %v486
      %v519 = vadd.f32 %v449, %v487
      %v520 = vadd.f32 %v450, %v488
      %v521 = vadd.f32 %v451, %v489
      %v522 = vadd.f32 %v452, %v490
      %v523 = vadd.f32 %v453, %v491
      %v524 = vadd.f32 %v454, %v492
      %v525 = vadd.f32 %v455, %v493
      %v526 = vadd.f32 %v456, %v494
      %v527 = vadd.f32 %v457, %v495
      %v528 = vadd.f32 %v458, %v496
      %v529 = vadd.f32 %v459, %v497
      %v530 = vadd.f32 %v460, %v498
      %v531 = vadd.f32 %v461, %v499
      %v532 = vadd.f32 %v462, %v500
      %v533 = vadd.f32 %v463, %v501
      %v534 = vadd.f32 %v464, %v502
      %s535 = scalar_lea.vmem %s185, 24
      %v536 = vld [vmem:[%s535 + $0x2] sm:$0x1]
      %v537 = vlaneseq
      %v538 = vshrl.u32 %v537, 7
      %v539 = vsub.s32 0, %v538
      %v540 = vrot.slane %v536, %v539
      %v541 = vmul.f32 %v324, %v540
      %v542 = vmul.f32 %v325, %v540
      %v543 = vmul.f32 %v326, %v540
      %v544 = vmul.f32 %v327, %v540
      %v545 = vmul.f32 %v328, %v540
      %v546 = vmul.f32 %v329, %v540
      %v547 = vmul.f32 %v330, %v540
      %v548 = vmul.f32 %v331, %v540
      %v549 = vmul.f32 %v332, %v540
      %v550 = vmul.f32 %v333, %v540
      %v551 = vmul.f32 %v334, %v540
      %v552 = vmul.f32 %v335, %v540
      %v553 = vmul.f32 %v336, %v540
      %v554 = vmul.f32 %v337, %v540
      %v555 = vmul.f32 %v338, %v540
      %v556 = vmul.f32 %v339, %v540
      %v557 = vmul.f32 %v340, %v540
      %v558 = vmul.f32 %v341, %v540
      %v559 = vmul.f32 %v342, %v540
      %v560 = vmul.f32 %v343, %v540
      %v561 = vmul.f32 %v344, %v540
      %v562 = vmul.f32 %v345, %v540
      %v563 = vmul.f32 %v346, %v540
      %v564 = vmul.f32 %v347, %v540
      %v565 = vmul.f32 %v348, %v540
      %v566 = vmul.f32 %v349, %v540
      %v567 = vmul.f32 %v350, %v540
      %v568 = vmul.f32 %v351, %v540
      %v569 = vmul.f32 %v352, %v540
      %v570 = vmul.f32 %v353, %v540
      %v571 = vmul.f32 %v354, %v540
      %v572 = vmul.f32 %v355, %v540
      %v573 = vadd.f32 %v503, %v541
      %v574 = vadd.f32 %v504, %v542
      %v575 = vadd.f32 %v505, %v543
      %v576 = vadd.f32 %v506, %v544
      %v577 = vadd.f32 %v507, %v545
      %v578 = vadd.f32 %v508, %v546
      %v579 = vadd.f32 %v509, %v547
      %v580 = vadd.f32 %v510, %v548
      %v581 = vadd.f32 %v511, %v549
      %v582 = vadd.f32 %v512, %v550
      %v583 = vadd.f32 %v513, %v551
      %v584 = vadd.f32 %v514, %v552
      %v585 = vadd.f32 %v515, %v553
      %v586 = vadd.f32 %v516, %v554
      %v587 = vadd.f32 %v517, %v555
      %v588 = vadd.f32 %v518, %v556
      %v589 = vadd.f32 %v519, %v557
      %v590 = vadd.f32 %v520, %v558
      %v591 = vadd.f32 %v521, %v559
      %v592 = vadd.f32 %v522, %v560
      %v593 = vadd.f32 %v523, %v561
      %v594 = vadd.f32 %v524, %v562
      %v595 = vadd.f32 %v525, %v563
      %v596 = vadd.f32 %v526, %v564
      %v597 = vadd.f32 %v527, %v565
      %v598 = vadd.f32 %v528, %v566
      %v599 = vadd.f32 %v529, %v567
      %v600 = vadd.f32 %v530, %v568
      %v601 = vadd.f32 %v531, %v569
      %v602 = vadd.f32 %v532, %v570
      %v603 = vadd.f32 %v533, %v571
      %v604 = vadd.f32 %v534, %v572
      %s605 = scalar_lea.vmem %s185, 32
      %v606 = vld [vmem:[%s605 + $0x2] sm:$0x1]
      %v607 = vlaneseq
      %v608 = vshrl.u32 %v607, 7
      %v609 = vsub.s32 0, %v608
      %v610 = vrot.slane %v606, %v609
      %v611 = vmul.f32 %v326, %v610
      %v612 = vmul.f32 %v327, %v610
      %v613 = vmul.f32 %v328, %v610
      %v614 = vmul.f32 %v329, %v610
      %v615 = vmul.f32 %v330, %v610
      %v616 = vmul.f32 %v331, %v610
      %v617 = vmul.f32 %v332, %v610
      %v618 = vmul.f32 %v333, %v610
      %v619 = vmul.f32 %v334, %v610
      %v620 = vmul.f32 %v335, %v610
      %v621 = vmul.f32 %v336, %v610
      %v622 = vmul.f32 %v337, %v610
      %v623 = vmul.f32 %v338, %v610
      %v624 = vmul.f32 %v339, %v610
      %v625 = vmul.f32 %v340, %v610
      %v626 = vmul.f32 %v341, %v610
      %v627 = vmul.f32 %v342, %v610
      %v628 = vmul.f32 %v343, %v610
      %v629 = vmul.f32 %v344, %v610
      %v630 = vmul.f32 %v345, %v610
      %v631 = vmul.f32 %v346, %v610
      %v632 = vmul.f32 %v347, %v610
      %v633 = vmul.f32 %v348, %v610
      %v634 = vmul.f32 %v349, %v610
      %v635 = vmul.f32 %v350, %v610
      %v636 = vmul.f32 %v351, %v610
      %v637 = vmul.f32 %v352, %v610
      %v638 = vmul.f32 %v353, %v610
      %v639 = vmul.f32 %v354, %v610
      %v640 = vmul.f32 %v355, %v610
      %v641 = vmul.f32 %v356, %v610
      %v642 = vmul.f32 %v357, %v610
      %v643 = vadd.f32 %v573, %v611
      %v644 = vadd.f32 %v574, %v612
      %v645 = vadd.f32 %v575, %v613
      %v646 = vadd.f32 %v576, %v614
      %v647 = vadd.f32 %v577, %v615
      %v648 = vadd.f32 %v578, %v616
      %v649 = vadd.f32 %v579, %v617
      %v650 = vadd.f32 %v580, %v618
      %v651 = vadd.f32 %v581, %v619
      %v652 = vadd.f32 %v582, %v620
      %v653 = vadd.f32 %v583, %v621
      %v654 = vadd.f32 %v584, %v622
      %v655 = vadd.f32 %v585, %v623
      %v656 = vadd.f32 %v586, %v624
      %v657 = vadd.f32 %v587, %v625
      %v658 = vadd.f32 %v588, %v626
      %v659 = vadd.f32 %v589, %v627
      %v660 = vadd.f32 %v590, %v628
      %v661 = vadd.f32 %v591, %v629
      %v662 = vadd.f32 %v592, %v630
      %v663 = vadd.f32 %v593, %v631
      %v664 = vadd.f32 %v594, %v632
      %v665 = vadd.f32 %v595, %v633
      %v666 = vadd.f32 %v596, %v634
      %v667 = vadd.f32 %v597, %v635
      %v668 = vadd.f32 %v598, %v636
      %v669 = vadd.f32 %v599, %v637
      %v670 = vadd.f32 %v600, %v638
      %v671 = vadd.f32 %v601, %v639
      %v672 = vadd.f32 %v602, %v640
      %v673 = vadd.f32 %v603, %v641
      %v674 = vadd.f32 %v604, %v642
      %v675 = vld [vmem:[#allocation2 + $0x6] sm:$0xff]
      %v676 = vld [vmem:[#allocation2 + $0xe] sm:$0xff]
      %v677 = vld [vmem:[#allocation2 + $0x26] sm:$0xff]
      %v678 = vld [vmem:[#allocation2 + $0x2e] sm:$0xff]
      %v679 = vld [vmem:[#allocation2 + $0x46] sm:$0xff]
      %v680 = vld [vmem:[#allocation2 + $0x4e] sm:$0xff]
      %v681 = vld [vmem:[#allocation2 + $0x66] sm:$0xff]
      %v682 = vld [vmem:[#allocation2 + $0x6e] sm:$0xff]
      %v683 = vld [vmem:[#allocation2 + $0x86] sm:$0xff]
      %v684 = vld [vmem:[#allocation2 + $0x8e] sm:$0xff]
      %v685 = vld [vmem:[#allocation2 + $0xa6] sm:$0xff]
      %v686 = vld [vmem:[#allocation2 + $0xae] sm:$0xff]
      %v687 = vld [vmem:[#allocation2 + $0xc6] sm:$0xff]
      %v688 = vld [vmem:[#allocation2 + $0xce] sm:$0xff]
      %v689 = vld [vmem:[#allocation2 + $0xe6] sm:$0xff]
      %v690 = vld [vmem:[#allocation2 + $0xee] sm:$0xff]
      %v691 = vld [vmem:[#allocation2 + $0x106] sm:$0xff]
      %v692 = vld [vmem:[#allocation2 + $0x10e] sm:$0xff]
      %v693 = vld [vmem:[#allocation2 + $0x126] sm:$0xff]
      %v694 = vld [vmem:[#allocation2 + $0x12e] sm:$0xff]
      %v695 = vld [vmem:[#allocation2 + $0x146] sm:$0xff]
      %v696 = vld [vmem:[#allocation2 + $0x14e] sm:$0xff]
      %v697 = vld [vmem:[#allocation2 + $0x166] sm:$0xff]
      %v698 = vld [vmem:[#allocation2 + $0x16e] sm:$0xff]
      %v699 = vld [vmem:[#allocation2 + $0x186] sm:$0xff]
      %v700 = vld [vmem:[#allocation2 + $0x18e] sm:$0xff]
      %v701 = vld [vmem:[#allocation2 + $0x1a6] sm:$0xff]
      %v702 = vld [vmem:[#allocation2 + $0x1ae] sm:$0xff]
      %v703 = vld [vmem:[#allocation2 + $0x1c6] sm:$0xff]
      %v704 = vld [vmem:[#allocation2 + $0x1ce] sm:$0xff]
      %v705 = vld [vmem:[#allocation2 + $0x1e6] sm:$0xff]
      %v706 = vld [vmem:[#allocation2 + $0x1ee] sm:$0xff]
      %v707 = vld [vmem:[#allocation2 + $0x206] sm:$0xff]
      %v708 = vld [vmem:[#allocation2 + $0x20e] sm:$0xff]
      %v709 = vld [vmem:[#allocation2 + $0x226] sm:$0xff]
      %v710 = vld [vmem:[#allocation2 + $0x22e] sm:$0xff]
      %v711 = vld [vmem:[#allocation2 + $0x246] sm:$0xff]
      %v712 = vld [vmem:[#allocation2 + $0x24e] sm:$0xff]
      %v713 = vld [vmem:[#allocation2 + $0x266] sm:$0xff]
      %v714 = vld [vmem:[#allocation2 + $0x26e] sm:$0xff]
      %v715 = vld [vmem:[%s185] sm:$0x1]
      %v716 = vlaneseq
      %v717 = vshrl.u32 %v716, 7
      %v718 = vsub.s32 0, %v717
      %v719 = vrot.slane %v715, %v718
      %v720 = vmul.f32 %v675, %v719
      %v721 = vmul.f32 %v676, %v719
      %v722 = vmul.f32 %v677, %v719
      %v723 = vmul.f32 %v678, %v719
      %v724 = vmul.f32 %v679, %v719
      %v725 = vmul.f32 %v680, %v719
      %v726 = vmul.f32 %v681, %v719
      %v727 = vmul.f32 %v682, %v719
      %v728 = vmul.f32 %v683, %v719
      %v729 = vmul.f32 %v684, %v719
      %v730 = vmul.f32 %v685, %v719
      %v731 = vmul.f32 %v686, %v719
      %v732 = vmul.f32 %v687, %v719
      %v733 = vmul.f32 %v688, %v719
      %v734 = vmul.f32 %v689, %v719
      %v735 = vmul.f32 %v690, %v719
      %v736 = vmul.f32 %v691, %v719
      %v737 = vmul.f32 %v692, %v719
      %v738 = vmul.f32 %v693, %v719
      %v739 = vmul.f32 %v694, %v719
      %v740 = vmul.f32 %v695, %v719
      %v741 = vmul.f32 %v696, %v719
      %v742 = vmul.f32 %v697, %v719
      %v743 = vmul.f32 %v698, %v719
      %v744 = vmul.f32 %v699, %v719
      %v745 = vmul.f32 %v700, %v719
      %v746 = vmul.f32 %v701, %v719
      %v747 = vmul.f32 %v702, %v719
      %v748 = vmul.f32 %v703, %v719
      %v749 = vmul.f32 %v704, %v719
      %v750 = vmul.f32 %v705, %v719
      %v751 = vmul.f32 %v706, %v719
      %v752 = vld [vmem:[%s395] sm:$0x1]
      %v753 = vlaneseq
      %v754 = vshrl.u32 %v753, 7
      %v755 = vsub.s32 0, %v754
      %v756 = vrot.slane %v752, %v755
      %v757 = vmul.f32 %v677, %v756
      %v758 = vmul.f32 %v678, %v756
      %v759 = vmul.f32 %v679, %v756
      %v760 = vmul.f32 %v680, %v756
      %v761 = vmul.f32 %v681, %v756
      %v762 = vmul.f32 %v682, %v756
      %v763 = vmul.f32 %v683, %v756
      %v764 = vmul.f32 %v684, %v756
      %v765 = vmul.f32 %v685, %v756
      %v766 = vmul.f32 %v686, %v756
      %v767 = vmul.f32 %v687, %v756
      %v768 = vmul.f32 %v688, %v756
      %v769 = vmul.f32 %v689, %v756
      %v770 = vmul.f32 %v690, %v756
      %v771 = vmul.f32 %v691, %v756
      %v772 = vmul.f32 %v692, %v756
      %v773 = vmul.f32 %v693, %v756
      %v774 = vmul.f32 %v694, %v756
      %v775 = vmul.f32 %v695, %v756
      %v776 = vmul.f32 %v696, %v756
      %v777 = vmul.f32 %v697, %v756
      %v778 = vmul.f32 %v698, %v756
      %v779 = vmul.f32 %v699, %v756
      %v780 = vmul.f32 %v700, %v756
      %v781 = vmul.f32 %v701, %v756
      %v782 = vmul.f32 %v702, %v756
      %v783 = vmul.f32 %v703, %v756
      %v784 = vmul.f32 %v704, %v756
      %v785 = vmul.f32 %v705, %v756
      %v786 = vmul.f32 %v706, %v756
      %v787 = vmul.f32 %v707, %v756
      %v788 = vmul.f32 %v708, %v756
      %v789 = vadd.f32 %v720, %v757
      %v790 = vadd.f32 %v721, %v758
      %v791 = vadd.f32 %v722, %v759
      %v792 = vadd.f32 %v723, %v760
      %v793 = vadd.f32 %v724, %v761
      %v794 = vadd.f32 %v725, %v762
      %v795 = vadd.f32 %v726, %v763
      %v796 = vadd.f32 %v727, %v764
      %v797 = vadd.f32 %v728, %v765
      %v798 = vadd.f32 %v729, %v766
      %v799 = vadd.f32 %v730, %v767
      %v800 = vadd.f32 %v731, %v768
      %v801 = vadd.f32 %v732, %v769
      %v802 = vadd.f32 %v733, %v770
      %v803 = vadd.f32 %v734, %v771
      %v804 = vadd.f32 %v735, %v772
      %v805 = vadd.f32 %v736, %v773
      %v806 = vadd.f32 %v737, %v774
      %v807 = vadd.f32 %v738, %v775
      %v808 = vadd.f32 %v739, %v776
      %v809 = vadd.f32 %v740, %v777
      %v810 = vadd.f32 %v741, %v778
      %v811 = vadd.f32 %v742, %v779
      %v812 = vadd.f32 %v743, %v780
      %v813 = vadd.f32 %v744, %v781
      %v814 = vadd.f32 %v745, %v782
      %v815 = vadd.f32 %v746, %v783
      %v816 = vadd.f32 %v747, %v784
      %v817 = vadd.f32 %v748, %v785
      %v818 = vadd.f32 %v749, %v786
      %v819 = vadd.f32 %v750, %v787
      %v820 = vadd.f32 %v751, %v788
      %v821 = vld [vmem:[%s465] sm:$0x1]
      %v822 = vlaneseq
      %v823 = vshrl.u32 %v822, 7
      %v824 = vsub.s32 0, %v823
      %v825 = vrot.slane %v821, %v824
      %v826 = vmul.f32 %v679, %v825
      %v827 = vmul.f32 %v680, %v825
      %v828 = vmul.f32 %v681, %v825
      %v829 = vmul.f32 %v682, %v825
      %v830 = vmul.f32 %v683, %v825
      %v831 = vmul.f32 %v684, %v825
      %v832 = vmul.f32 %v685, %v825
      %v833 = vmul.f32 %v686, %v825
      %v834 = vmul.f32 %v687, %v825
      %v835 = vmul.f32 %v688, %v825
      %v836 = vmul.f32 %v689, %v825
      %v837 = vmul.f32 %v690, %v825
      %v838 = vmul.f32 %v691, %v825
      %v839 = vmul.f32 %v692, %v825
      %v840 = vmul.f32 %v693, %v825
      %v841 = vmul.f32 %v694, %v825
      %v842 = vmul.f32 %v695, %v825
      %v843 = vmul.f32 %v696, %v825
      %v844 = vmul.f32 %v697, %v825
      %v845 = vmul.f32 %v698, %v825
      %v846 = vmul.f32 %v699, %v825
      %v847 = vmul.f32 %v700, %v825
      %v848 = vmul.f32 %v701, %v825
      %v849 = vmul.f32 %v702, %v825
      %v850 = vmul.f32 %v703, %v825
      %v851 = vmul.f32 %v704, %v825
      %v852 = vmul.f32 %v705, %v825
      %v853 = vmul.f32 %v706, %v825
      %v854 = vmul.f32 %v707, %v825
      %v855 = vmul.f32 %v708, %v825
      %v856 = vmul.f32 %v709, %v825
      %v857 = vmul.f32 %v710, %v825
      %v858 = vadd.f32 %v789, %v826
      %v859 = vadd.f32 %v790, %v827
      %v860 = vadd.f32 %v791, %v828
      %v861 = vadd.f32 %v792, %v829
      %v862 = vadd.f32 %v793, %v830
      %v863 = vadd.f32 %v794, %v831
      %v864 = vadd.f32 %v795, %v832
      %v865 = vadd.f32 %v796, %v833
      %v866 = vadd.f32 %v797, %v834
      %v867 = vadd.f32 %v798, %v835
      %v868 = vadd.f32 %v799, %v836
      %v869 = vadd.f32 %v800, %v837
      %v870 = vadd.f32 %v801, %v838
      %v871 = vadd.f32 %v802, %v839
      %v872 = vadd.f32 %v803, %v840
      %v873 = vadd.f32 %v804, %v841
      %v874 = vadd.f32 %v805, %v842
      %v875 = vadd.f32 %v806, %v843
      %v876 = vadd.f32 %v807, %v844
      %v877 = vadd.f32 %v808, %v845
      %v878 = vadd.f32 %v809, %v846
      %v879 = vadd.f32 %v810, %v847
      %v880 = vadd.f32 %v811, %v848
      %v881 = vadd.f32 %v812, %v849
      %v882 = vadd.f32 %v813, %v850
      %v883 = vadd.f32 %v814, %v851
      %v884 = vadd.f32 %v815, %v852
      %v885 = vadd.f32 %v816, %v853
      %v886 = vadd.f32 %v817, %v854
      %v887 = vadd.f32 %v818, %v855
      %v888 = vadd.f32 %v819, %v856
      %v889 = vadd.f32 %v820, %v857
      %v890 = vld [vmem:[%s535] sm:$0x1]
      %v891 = vlaneseq
      %v892 = vshrl.u32 %v891, 7
      %v893 = vsub.s32 0, %v892
      %v894 = vrot.slane %v890, %v893
      %v895 = vmul.f32 %v681, %v894
      %v896 = vmul.f32 %v682, %v894
      %v897 = vmul.f32 %v683, %v894
      %v898 = vmul.f32 %v684, %v894
      %v899 = vmul.f32 %v685, %v894
      %v900 = vmul.f32 %v686, %v894
      %v901 = vmul.f32 %v687, %v894
      %v902 = vmul.f32 %v688, %v894
      %v903 = vmul.f32 %v689, %v894
      %v904 = vmul.f32 %v690, %v894
      %v905 = vmul.f32 %v691, %v894
      %v906 = vmul.f32 %v692, %v894
      %v907 = vmul.f32 %v693, %v894
      %v908 = vmul.f32 %v694, %v894
      %v909 = vmul.f32 %v695, %v894
      %v910 = vmul.f32 %v696, %v894
      %v911 = vmul.f32 %v697, %v894
      %v912 = vmul.f32 %v698, %v894
      %v913 = vmul.f32 %v699, %v894
      %v914 = vmul.f32 %v700, %v894
      %v915 = vmul.f32 %v701, %v894
      %v916 = vmul.f32 %v702, %v894
      %v917 = vmul.f32 %v703, %v894
      %v918 = vmul.f32 %v704, %v894
      %v919 = vmul.f32 %v705, %v894
      %v920 = vmul.f32 %v706, %v894
      %v921 = vmul.f32 %v707, %v894
      %v922 = vmul.f32 %v708, %v894
      %v923 = vmul.f32 %v709, %v894
      %v924 = vmul.f32 %v710, %v894
      %v925 = vmul.f32 %v711, %v894
      %v926 = vmul.f32 %v712, %v894
      %v927 = vadd.f32 %v858, %v895
      %v928 = vadd.f32 %v859, %v896
      %v929 = vadd.f32 %v860, %v897
      %v930 = vadd.f32 %v861, %v898
      %v931 = vadd.f32 %v862, %v899
      %v932 = vadd.f32 %v863, %v900
      %v933 = vadd.f32 %v864, %v901
      %v934 = vadd.f32 %v865, %v902
      %v935 = vadd.f32 %v866, %v903
      %v936 = vadd.f32 %v867, %v904
      %v937 = vadd.f32 %v868, %v905
      %v938 = vadd.f32 %v869, %v906
      %v939 = vadd.f32 %v870, %v907
      %v940 = vadd.f32 %v871, %v908
      %v941 = vadd.f32 %v872, %v909
      %v942 = vadd.f32 %v873, %v910
      %v943 = vadd.f32 %v874, %v911
      %v944 = vadd.f32 %v875, %v912
      %v945 = vadd.f32 %v876, %v913
      %v946 = vadd.f32 %v877, %v914
      %v947 = vadd.f32 %v878, %v915
      %v948 = vadd.f32 %v879, %v916
      %v949 = vadd.f32 %v880, %v917
      %v950 = vadd.f32 %v881, %v918
      %v951 = vadd.f32 %v882, %v919
      %v952 = vadd.f32 %v883, %v920
      %v953 = vadd.f32 %v884, %v921
      %v954 = vadd.f32 %v885, %v922
      %v955 = vadd.f32 %v886, %v923
      %v956 = vadd.f32 %v887, %v924
      %v957 = vadd.f32 %v888, %v925
      %v958 = vadd.f32 %v889, %v926
      %v959 = vld [vmem:[%s605] sm:$0x1]
      %v960 = vlaneseq
      %v961 = vshrl.u32 %v960, 7
      %v962 = vsub.s32 0, %v961
      %v963 = vrot.slane %v959, %v962
      %v964 = vmul.f32 %v683, %v963
      %v965 = vmul.f32 %v684, %v963
      %v966 = vmul.f32 %v685, %v963
      %v967 = vmul.f32 %v686, %v963
      %v968 = vmul.f32 %v687, %v963
      %v969 = vmul.f32 %v688, %v963
      %v970 = vmul.f32 %v689, %v963
      %v971 = vmul.f32 %v690, %v963
      %v972 = vmul.f32 %v691, %v963
      %v973 = vmul.f32 %v692, %v963
      %v974 = vmul.f32 %v693, %v963
      %v975 = vmul.f32 %v694, %v963
      %v976 = vmul.f32 %v695, %v963
      %v977 = vmul.f32 %v696, %v963
      %v978 = vmul.f32 %v697, %v963
      %v979 = vmul.f32 %v698, %v963
      %v980 = vmul.f32 %v699, %v963
      %v981 = vmul.f32 %v700, %v963
      %v982 = vmul.f32 %v701, %v963
      %v983 = vmul.f32 %v702, %v963
      %v984 = vmul.f32 %v703, %v963
      %v985 = vmul.f32 %v704, %v963
      %v986 = vmul.f32 %v705, %v963
      %v987 = vmul.f32 %v706, %v963
      %v988 = vmul.f32 %v707, %v963
      %v989 = vmul.f32 %v708, %v963
      %v990 = vmul.f32 %v709, %v963
      %v991 = vmul.f32 %v710, %v963
      %v992 = vmul.f32 %v711, %v963
      %v993 = vmul.f32 %v712, %v963
      %v994 = vmul.f32 %v713, %v963
      %v995 = vmul.f32 %v714, %v963
      %v996 = vadd.f32 %v927, %v964
      %v997 = vadd.f32 %v928, %v965
      %v998 = vadd.f32 %v929, %v966
      %v999 = vadd.f32 %v930, %v967
      %v1000 = vadd.f32 %v931, %v968
      %v1001 = vadd.f32 %v932, %v969
      %v1002 = vadd.f32 %v933, %v970
      %v1003 = vadd.f32 %v934, %v971
      %v1004 = vadd.f32 %v935, %v972
      %v1005 = vadd.f32 %v936, %v973
      %v1006 = vadd.f32 %v937, %v974
      %v1007 = vadd.f32 %v938, %v975
      %v1008 = vadd.f32 %v939, %v976
      %v1009 = vadd.f32 %v940, %v977
      %v1010 = vadd.f32 %v941, %v978
      %v1011 = vadd.f32 %v942, %v979
      %v1012 = vadd.f32 %v943, %v980
      %v1013 = vadd.f32 %v944, %v981
      %v1014 = vadd.f32 %v945, %v982
      %v1015 = vadd.f32 %v946, %v983
      %v1016 = vadd.f32 %v947, %v984
      %v1017 = vadd.f32 %v948, %v985
      %v1018 = vadd.f32 %v949, %v986
      %v1019 = vadd.f32 %v950, %v987
      %v1020 = vadd.f32 %v951, %v988
      %v1021 = vadd.f32 %v952, %v989
      %v1022 = vadd.f32 %v953, %v990
      %v1023 = vadd.f32 %v954, %v991
      %v1024 = vadd.f32 %v955, %v992
      %v1025 = vadd.f32 %v956, %v993
      %v1026 = vadd.f32 %v957, %v994
      %v1027 = vadd.f32 %v958, %v995
      %v1028 = vadd.f32 %v643, %v996
      %v1029 = vadd.f32 %v644, %v997
      %v1030 = vadd.f32 %v645, %v998
      %v1031 = vadd.f32 %v646, %v999
      %v1032 = vadd.f32 %v647, %v1000
      %v1033 = vadd.f32 %v648, %v1001
      %v1034 = vadd.f32 %v649, %v1002
      %v1035 = vadd.f32 %v650, %v1003
      %v1036 = vadd.f32 %v651, %v1004
      %v1037 = vadd.f32 %v652, %v1005
      %v1038 = vadd.f32 %v653, %v1006
      %v1039 = vadd.f32 %v654, %v1007
      %v1040 = vadd.f32 %v655, %v1008
      %v1041 = vadd.f32 %v656, %v1009
      %v1042 = vadd.f32 %v657, %v1010
      %v1043 = vadd.f32 %v658, %v1011
      %v1044 = vadd.f32 %v659, %v1012
      %v1045 = vadd.f32 %v660, %v1013
      %v1046 = vadd.f32 %v661, %v1014
      %v1047 = vadd.f32 %v662, %v1015
      %v1048 = vadd.f32 %v663, %v1016
      %v1049 = vadd.f32 %v664, %v1017
      %v1050 = vadd.f32 %v665, %v1018
      %v1051 = vadd.f32 %v666, %v1019
      %v1052 = vadd.f32 %v667, %v1020
      %v1053 = vadd.f32 %v668, %v1021
      %v1054 = vadd.f32 %v669, %v1022
      %v1055 = vadd.f32 %v670, %v1023
      %v1056 = vadd.f32 %v671, %v1024
      %v1057 = vadd.f32 %v672, %v1025
      %v1058 = vadd.f32 %v673, %v1026
      %v1059 = vadd.f32 %v674, %v1027
      %v1060 = vld [vmem:[#allocation2 + $0x7] sm:$0xff]
      %v1061 = vld [vmem:[#allocation2 + $0xf] sm:$0xff]
      %v1062 = vld [vmem:[#allocation2 + $0x27] sm:$0xff]
      %v1063 = vld [vmem:[#allocation2 + $0x2f] sm:$0xff]
      %v1064 = vld [vmem:[#allocation2 + $0x47] sm:$0xff]
      %v1065 = vld [vmem:[#allocation2 + $0x4f] sm:$0xff]
      %v1066 = vld [vmem:[#allocation2 + $0x67] sm:$0xff]
      %v1067 = vld [vmem:[#allocation2 + $0x6f] sm:$0xff]
      %v1068 = vld [vmem:[#allocation2 + $0x87] sm:$0xff]
      %v1069 = vld [vmem:[#allocation2 + $0x8f] sm:$0xff]
      %v1070 = vld [vmem:[#allocation2 + $0xa7] sm:$0xff]
      %v1071 = vld [vmem:[#allocation2 + $0xaf] sm:$0xff]
      %v1072 = vld [vmem:[#allocation2 + $0xc7] sm:$0xff]
      %v1073 = vld [vmem:[#allocation2 + $0xcf] sm:$0xff]
      %v1074 = vld [vmem:[#allocation2 + $0xe7] sm:$0xff]
      %v1075 = vld [vmem:[#allocation2 + $0xef] sm:$0xff]
      %v1076 = vld [vmem:[#allocation2 + $0x107] sm:$0xff]
      %v1077 = vld [vmem:[#allocation2 + $0x10f] sm:$0xff]
      %v1078 = vld [vmem:[#allocation2 + $0x127] sm:$0xff]
      %v1079 = vld [vmem:[#allocation2 + $0x12f] sm:$0xff]
      %v1080 = vld [vmem:[#allocation2 + $0x147] sm:$0xff]
      %v1081 = vld [vmem:[#allocation2 + $0x14f] sm:$0xff]
      %v1082 = vld [vmem:[#allocation2 + $0x167] sm:$0xff]
      %v1083 = vld [vmem:[#allocation2 + $0x16f] sm:$0xff]
      %v1084 = vld [vmem:[#allocation2 + $0x187] sm:$0xff]
      %v1085 = vld [vmem:[#allocation2 + $0x18f] sm:$0xff]
      %v1086 = vld [vmem:[#allocation2 + $0x1a7] sm:$0xff]
      %v1087 = vld [vmem:[#allocation2 + $0x1af] sm:$0xff]
      %v1088 = vld [vmem:[#allocation2 + $0x1c7] sm:$0xff]
      %v1089 = vld [vmem:[#allocation2 + $0x1cf] sm:$0xff]
      %v1090 = vld [vmem:[#allocation2 + $0x1e7] sm:$0xff]
      %v1091 = vld [vmem:[#allocation2 + $0x1ef] sm:$0xff]
      %v1092 = vld [vmem:[#allocation2 + $0x207] sm:$0xff]
      %v1093 = vld [vmem:[#allocation2 + $0x20f] sm:$0xff]
      %v1094 = vld [vmem:[#allocation2 + $0x227] sm:$0xff]
      %v1095 = vld [vmem:[#allocation2 + $0x22f] sm:$0xff]
      %v1096 = vld [vmem:[#allocation2 + $0x247] sm:$0xff]
      %v1097 = vld [vmem:[#allocation2 + $0x24f] sm:$0xff]
      %v1098 = vld [vmem:[#allocation2 + $0x267] sm:$0xff]
      %v1099 = vld [vmem:[#allocation2 + $0x26f] sm:$0xff]
      %v1100 = vld [vmem:[%s185 + $0x1] sm:$0x1]
      %v1101 = vlaneseq
      %v1102 = vshrl.u32 %v1101, 7
      %v1103 = vsub.s32 0, %v1102
      %v1104 = vrot.slane %v1100, %v1103
      %v1105 = vmul.f32 %v1060, %v1104
      %v1106 = vmul.f32 %v1061, %v1104
      %v1107 = vmul.f32 %v1062, %v1104
      %v1108 = vmul.f32 %v1063, %v1104
      %v1109 = vmul.f32 %v1064, %v1104
      %v1110 = vmul.f32 %v1065, %v1104
      %v1111 = vmul.f32 %v1066, %v1104
      %v1112 = vmul.f32 %v1067, %v1104
      %v1113 = vmul.f32 %v1068, %v1104
      %v1114 = vmul.f32 %v1069, %v1104
      %v1115 = vmul.f32 %v1070, %v1104
      %v1116 = vmul.f32 %v1071, %v1104
      %v1117 = vmul.f32 %v1072, %v1104
      %v1118 = vmul.f32 %v1073, %v1104
      %v1119 = vmul.f32 %v1074, %v1104
      %v1120 = vmul.f32 %v1075, %v1104
      %v1121 = vmul.f32 %v1076, %v1104
      %v1122 = vmul.f32 %v1077, %v1104
      %v1123 = vmul.f32 %v1078, %v1104
      %v1124 = vmul.f32 %v1079, %v1104
      %v1125 = vmul.f32 %v1080, %v1104
      %v1126 = vmul.f32 %v1081, %v1104
      %v1127 = vmul.f32 %v1082, %v1104
      %v1128 = vmul.f32 %v1083, %v1104
      %v1129 = vmul.f32 %v1084, %v1104
      %v1130 = vmul.f32 %v1085, %v1104
      %v1131 = vmul.f32 %v1086, %v1104
      %v1132 = vmul.f32 %v1087, %v1104
      %v1133 = vmul.f32 %v1088, %v1104
      %v1134 = vmul.f32 %v1089, %v1104
      %v1135 = vmul.f32 %v1090, %v1104
      %v1136 = vmul.f32 %v1091, %v1104
      %v1137 = vld [vmem:[%s395 + $0x1] sm:$0x1]
      %v1138 = vlaneseq
      %v1139 = vshrl.u32 %v1138, 7
      %v1140 = vsub.s32 0, %v1139
      %v1141 = vrot.slane %v1137, %v1140
      %v1142 = vmul.f32 %v1062, %v1141
      %v1143 = vmul.f32 %v1063, %v1141
      %v1144 = vmul.f32 %v1064, %v1141
      %v1145 = vmul.f32 %v1065, %v1141
      %v1146 = vmul.f32 %v1066, %v1141
      %v1147 = vmul.f32 %v1067, %v1141
      %v1148 = vmul.f32 %v1068, %v1141
      %v1149 = vmul.f32 %v1069, %v1141
      %v1150 = vmul.f32 %v1070, %v1141
      %v1151 = vmul.f32 %v1071, %v1141
      %v1152 = vmul.f32 %v1072, %v1141
      %v1153 = vmul.f32 %v1073, %v1141
      %v1154 = vmul.f32 %v1074, %v1141
      %v1155 = vmul.f32 %v1075, %v1141
      %v1156 = vmul.f32 %v1076, %v1141
      %v1157 = vmul.f32 %v1077, %v1141
      %v1158 = vmul.f32 %v1078, %v1141
      %v1159 = vmul.f32 %v1079, %v1141
      %v1160 = vmul.f32 %v1080, %v1141
      %v1161 = vmul.f32 %v1081, %v1141
      %v1162 = vmul.f32 %v1082, %v1141
      %v1163 = vmul.f32 %v1083, %v1141
      %v1164 = vmul.f32 %v1084, %v1141
      %v1165 = vmul.f32 %v1085, %v1141
      %v1166 = vmul.f32 %v1086, %v1141
      %v1167 = vmul.f32 %v1087, %v1141
      %v1168 = vmul.f32 %v1088, %v1141
      %v1169 = vmul.f32 %v1089, %v1141
      %v1170 = vmul.f32 %v1090, %v1141
      %v1171 = vmul.f32 %v1091, %v1141
      %v1172 = vmul.f32 %v1092, %v1141
      %v1173 = vmul.f32 %v1093, %v1141
      %v1174 = vadd.f32 %v1105, %v1142
      %v1175 = vadd.f32 %v1106, %v1143
      %v1176 = vadd.f32 %v1107, %v1144
      %v1177 = vadd.f32 %v1108, %v1145
      %v1178 = vadd.f32 %v1109, %v1146
      %v1179 = vadd.f32 %v1110, %v1147
      %v1180 = vadd.f32 %v1111, %v1148
      %v1181 = vadd.f32 %v1112, %v1149
      %v1182 = vadd.f32 %v1113, %v1150
      %v1183 = vadd.f32 %v1114, %v1151
      %v1184 = vadd.f32 %v1115, %v1152
      %v1185 = vadd.f32 %v1116, %v1153
      %v1186 = vadd.f32 %v1117, %v1154
      %v1187 = vadd.f32 %v1118, %v1155
      %v1188 = vadd.f32 %v1119, %v1156
      %v1189 = vadd.f32 %v1120, %v1157
      %v1190 = vadd.f32 %v1121, %v1158
      %v1191 = vadd.f32 %v1122, %v1159
      %v1192 = vadd.f32 %v1123, %v1160
      %v1193 = vadd.f32 %v1124, %v1161
      %v1194 = vadd.f32 %v1125, %v1162
      %v1195 = vadd.f32 %v1126, %v1163
      %v1196 = vadd.f32 %v1127, %v1164
      %v1197 = vadd.f32 %v1128, %v1165
      %v1198 = vadd.f32 %v1129, %v1166
      %v1199 = vadd.f32 %v1130, %v1167
      %v1200 = vadd.f32 %v1131, %v1168
      %v1201 = vadd.f32 %v1132, %v1169
      %v1202 = vadd.f32 %v1133, %v1170
      %v1203 = vadd.f32 %v1134, %v1171
      %v1204 = vadd.f32 %v1135, %v1172
      %v1205 = vadd.f32 %v1136, %v1173
      %v1206 = vld [vmem:[%s465 + $0x1] sm:$0x1]
      %v1207 = vlaneseq
      %v1208 = vshrl.u32 %v1207, 7
      %v1209 = vsub.s32 0, %v1208
      %v1210 = vrot.slane %v1206, %v1209
      %v1211 = vmul.f32 %v1064, %v1210
      %v1212 = vmul.f32 %v1065, %v1210
      %v1213 = vmul.f32 %v1066, %v1210
      %v1214 = vmul.f32 %v1067, %v1210
      %v1215 = vmul.f32 %v1068, %v1210
      %v1216 = vmul.f32 %v1069, %v1210
      %v1217 = vmul.f32 %v1070, %v1210
      %v1218 = vmul.f32 %v1071, %v1210
      %v1219 = vmul.f32 %v1072, %v1210
      %v1220 = vmul.f32 %v1073, %v1210
      %v1221 = vmul.f32 %v1074, %v1210
      %v1222 = vmul.f32 %v1075, %v1210
      %v1223 = vmul.f32 %v1076, %v1210
      %v1224 = vmul.f32 %v1077, %v1210
      %v1225 = vmul.f32 %v1078, %v1210
      %v1226 = vmul.f32 %v1079, %v1210
      %v1227 = vmul.f32 %v1080, %v1210
      %v1228 = vmul.f32 %v1081, %v1210
      %v1229 = vmul.f32 %v1082, %v1210
      %v1230 = vmul.f32 %v1083, %v1210
      %v1231 = vmul.f32 %v1084, %v1210
      %v1232 = vmul.f32 %v1085, %v1210
      %v1233 = vmul.f32 %v1086, %v1210
      %v1234 = vmul.f32 %v1087, %v1210
      %v1235 = vmul.f32 %v1088, %v1210
      %v1236 = vmul.f32 %v1089, %v1210
      %v1237 = vmul.f32 %v1090, %v1210
      %v1238 = vmul.f32 %v1091, %v1210
      %v1239 = vmul.f32 %v1092, %v1210
      %v1240 = vmul.f32 %v1093, %v1210
      %v1241 = vmul.f32 %v1094, %v1210
      %v1242 = vmul.f32 %v1095, %v1210
      %v1243 = vadd.f32 %v1174, %v1211
      %v1244 = vadd.f32 %v1175, %v1212
      %v1245 = vadd.f32 %v1176, %v1213
      %v1246 = vadd.f32 %v1177, %v1214
      %v1247 = vadd.f32 %v1178, %v1215
      %v1248 = vadd.f32 %v1179, %v1216
      %v1249 = vadd.f32 %v1180, %v1217
      %v1250 = vadd.f32 %v1181, %v1218
      %v1251 = vadd.f32 %v1182, %v1219
      %v1252 = vadd.f32 %v1183, %v1220
      %v1253 = vadd.f32 %v1184, %v1221
      %v1254 = vadd.f32 %v1185, %v1222
      %v1255 = vadd.f32 %v1186, %v1223
      %v1256 = vadd.f32 %v1187, %v1224
      %v1257 = vadd.f32 %v1188, %v1225
      %v1258 = vadd.f32 %v1189, %v1226
      %v1259 = vadd.f32 %v1190, %v1227
      %v1260 = vadd.f32 %v1191, %v1228
      %v1261 = vadd.f32 %v1192, %v1229
      %v1262 = vadd.f32 %v1193, %v1230
      %v1263 = vadd.f32 %v1194, %v1231
      %v1264 = vadd.f32 %v1195, %v1232
      %v1265 = vadd.f32 %v1196, %v1233
      %v1266 = vadd.f32 %v1197, %v1234
      %v1267 = vadd.f32 %v1198, %v1235
      %v1268 = vadd.f32 %v1199, %v1236
      %v1269 = vadd.f32 %v1200, %v1237
      %v1270 = vadd.f32 %v1201, %v1238
      %v1271 = vadd.f32 %v1202, %v1239
      %v1272 = vadd.f32 %v1203, %v1240
      %v1273 = vadd.f32 %v1204, %v1241
      %v1274 = vadd.f32 %v1205, %v1242
      %v1275 = vld [vmem:[%s535 + $0x1] sm:$0x1]
      %v1276 = vlaneseq
      %v1277 = vshrl.u32 %v1276, 7
      %v1278 = vsub.s32 0, %v1277
      %v1279 = vrot.slane %v1275, %v1278
      %v1280 = vmul.f32 %v1066, %v1279
      %v1281 = vmul.f32 %v1067, %v1279
      %v1282 = vmul.f32 %v1068, %v1279
      %v1283 = vmul.f32 %v1069, %v1279
      %v1284 = vmul.f32 %v1070, %v1279
      %v1285 = vmul.f32 %v1071, %v1279
      %v1286 = vmul.f32 %v1072, %v1279
      %v1287 = vmul.f32 %v1073, %v1279
      %v1288 = vmul.f32 %v1074, %v1279
      %v1289 = vmul.f32 %v1075, %v1279
      %v1290 = vmul.f32 %v1076, %v1279
      %v1291 = vmul.f32 %v1077, %v1279
      %v1292 = vmul.f32 %v1078, %v1279
      %v1293 = vmul.f32 %v1079, %v1279
      %v1294 = vmul.f32 %v1080, %v1279
      %v1295 = vmul.f32 %v1081, %v1279
      %v1296 = vmul.f32 %v1082, %v1279
      %v1297 = vmul.f32 %v1083, %v1279
      %v1298 = vmul.f32 %v1084, %v1279
      %v1299 = vmul.f32 %v1085, %v1279
      %v1300 = vmul.f32 %v1086, %v1279
      %v1301 = vmul.f32 %v1087, %v1279
      %v1302 = vmul.f32 %v1088, %v1279
      %v1303 = vmul.f32 %v1089, %v1279
      %v1304 = vmul.f32 %v1090, %v1279
      %v1305 = vmul.f32 %v1091, %v1279
      %v1306 = vmul.f32 %v1092, %v1279
      %v1307 = vmul.f32 %v1093, %v1279
      %v1308 = vmul.f32 %v1094, %v1279
      %v1309 = vmul.f32 %v1095, %v1279
      %v1310 = vmul.f32 %v1096, %v1279
      %v1311 = vmul.f32 %v1097, %v1279
      %v1312 = vadd.f32 %v1243, %v1280
      %v1313 = vadd.f32 %v1244, %v1281
      %v1314 = vadd.f32 %v1245, %v1282
      %v1315 = vadd.f32 %v1246, %v1283
      %v1316 = vadd.f32 %v1247, %v1284
      %v1317 = vadd.f32 %v1248, %v1285
      %v1318 = vadd.f32 %v1249, %v1286
      %v1319 = vadd.f32 %v1250, %v1287
      %v1320 = vadd.f32 %v1251, %v1288
      %v1321 = vadd.f32 %v1252, %v1289
      %v1322 = vadd.f32 %v1253, %v1290
      %v1323 = vadd.f32 %v1254, %v1291
      %v1324 = vadd.f32 %v1255, %v1292
      %v1325 = vadd.f32 %v1256, %v1293
      %v1326 = vadd.f32 %v1257, %v1294
      %v1327 = vadd.f32 %v1258, %v1295
      %v1328 = vadd.f32 %v1259, %v1296
      %v1329 = vadd.f32 %v1260, %v1297
      %v1330 = vadd.f32 %v1261, %v1298
      %v1331 = vadd.f32 %v1262, %v1299
      %v1332 = vadd.f32 %v1263, %v1300
      %v1333 = vadd.f32 %v1264, %v1301
      %v1334 = vadd.f32 %v1265, %v1302
      %v1335 = vadd.f32 %v1266, %v1303
      %v1336 = vadd.f32 %v1267, %v1304
      %v1337 = vadd.f32 %v1268, %v1305
      %v1338 = vadd.f32 %v1269, %v1306
      %v1339 = vadd.f32 %v1270, %v1307
      %v1340 = vadd.f32 %v1271, %v1308
      %v1341 = vadd.f32 %v1272, %v1309
      %v1342 = vadd.f32 %v1273, %v1310
      %v1343 = vadd.f32 %v1274, %v1311
      %v1344 = vld [vmem:[%s605 + $0x1] sm:$0x1]
      %v1345 = vlaneseq
      %v1346 = vshrl.u32 %v1345, 7
      %v1347 = vsub.s32 0, %v1346
      %v1348 = vrot.slane %v1344, %v1347
      %v1349 = vmul.f32 %v1068, %v1348
      %v1350 = vmul.f32 %v1069, %v1348
      %v1351 = vmul.f32 %v1070, %v1348
      %v1352 = vmul.f32 %v1071, %v1348
      %v1353 = vmul.f32 %v1072, %v1348
      %v1354 = vmul.f32 %v1073, %v1348
      %v1355 = vmul.f32 %v1074, %v1348
      %v1356 = vmul.f32 %v1075, %v1348
      %v1357 = vmul.f32 %v1076, %v1348
      %v1358 = vmul.f32 %v1077, %v1348
      %v1359 = vmul.f32 %v1078, %v1348
      %v1360 = vmul.f32 %v1079, %v1348
      %v1361 = vmul.f32 %v1080, %v1348
      %v1362 = vmul.f32 %v1081, %v1348
      %v1363 = vmul.f32 %v1082, %v1348
      %v1364 = vmul.f32 %v1083, %v1348
      %v1365 = vmul.f32 %v1084, %v1348
      %v1366 = vmul.f32 %v1085, %v1348
      %v1367 = vmul.f32 %v1086, %v1348
      %v1368 = vmul.f32 %v1087, %v1348
      %v1369 = vmul.f32 %v1088, %v1348
      %v1370 = vmul.f32 %v1089, %v1348
      %v1371 = vmul.f32 %v1090, %v1348
      %v1372 = vmul.f32 %v1091, %v1348
      %v1373 = vmul.f32 %v1092, %v1348
      %v1374 = vmul.f32 %v1093, %v1348
      %v1375 = vmul.f32 %v1094, %v1348
      %v1376 = vmul.f32 %v1095, %v1348
      %v1377 = vmul.f32 %v1096, %v1348
      %v1378 = vmul.f32 %v1097, %v1348
      %v1379 = vmul.f32 %v1098, %v1348
      %v1380 = vmul.f32 %v1099, %v1348
      %v1381 = vadd.f32 %v1312, %v1349
      %v1382 = vadd.f32 %v1313, %v1350
      %v1383 = vadd.f32 %v1314, %v1351
      %v1384 = vadd.f32 %v1315, %v1352
      %v1385 = vadd.f32 %v1316, %v1353
      %v1386 = vadd.f32 %v1317, %v1354
      %v1387 = vadd.f32 %v1318, %v1355
      %v1388 = vadd.f32 %v1319, %v1356
      %v1389 = vadd.f32 %v1320, %v1357
      %v1390 = vadd.f32 %v1321, %v1358
      %v1391 = vadd.f32 %v1322, %v1359
      %v1392 = vadd.f32 %v1323, %v1360
      %v1393 = vadd.f32 %v1324, %v1361
      %v1394 = vadd.f32 %v1325, %v1362
      %v1395 = vadd.f32 %v1326, %v1363
      %v1396 = vadd.f32 %v1327, %v1364
      %v1397 = vadd.f32 %v1328, %v1365
      %v1398 = vadd.f32 %v1329, %v1366
      %v1399 = vadd.f32 %v1330, %v1367
      %v1400 = vadd.f32 %v1331, %v1368
      %v1401 = vadd.f32 %v1332, %v1369
      %v1402 = vadd.f32 %v1333, %v1370
      %v1403 = vadd.f32 %v1334, %v1371
      %v1404 = vadd.f32 %v1335, %v1372
      %v1405 = vadd.f32 %v1336, %v1373
      %v1406 = vadd.f32 %v1337, %v1374
      %v1407 = vadd.f32 %v1338, %v1375
      %v1408 = vadd.f32 %v1339, %v1376
      %v1409 = vadd.f32 %v1340, %v1377
      %v1410 = vadd.f32 %v1341, %v1378
      %v1411 = vadd.f32 %v1342, %v1379
      %v1412 = vadd.f32 %v1343, %v1380
      %v1413 = vadd.f32 %v1028, %v1381
      %v1414 = vadd.f32 %v1029, %v1382
      %v1415 = vadd.f32 %v1030, %v1383
      %v1416 = vadd.f32 %v1031, %v1384
      %v1417 = vadd.f32 %v1032, %v1385
      %v1418 = vadd.f32 %v1033, %v1386
      %v1419 = vadd.f32 %v1034, %v1387
      %v1420 = vadd.f32 %v1035, %v1388
      %v1421 = vadd.f32 %v1036, %v1389
      %v1422 = vadd.f32 %v1037, %v1390
      %v1423 = vadd.f32 %v1038, %v1391
      %v1424 = vadd.f32 %v1039, %v1392
      %v1425 = vadd.f32 %v1040, %v1393
      %v1426 = vadd.f32 %v1041, %v1394
      %v1427 = vadd.f32 %v1042, %v1395
      %v1428 = vadd.f32 %v1043, %v1396
      %v1429 = vadd.f32 %v1044, %v1397
      %v1430 = vadd.f32 %v1045, %v1398
      %v1431 = vadd.f32 %v1046, %v1399
      %v1432 = vadd.f32 %v1047, %v1400
      %v1433 = vadd.f32 %v1048, %v1401
      %v1434 = vadd.f32 %v1049, %v1402
      %v1435 = vadd.f32 %v1050, %v1403
      %v1436 = vadd.f32 %v1051, %v1404
      %v1437 = vadd.f32 %v1052, %v1405
      %v1438 = vadd.f32 %v1053, %v1406
      %v1439 = vadd.f32 %v1054, %v1407
      %v1440 = vadd.f32 %v1055, %v1408
      %v1441 = vadd.f32 %v1056, %v1409
      %v1442 = vadd.f32 %v1057, %v1410
      %v1443 = vadd.f32 %v1058, %v1411
      %v1444 = vadd.f32 %v1059, %v1412
      %v1445 = vld [vmem:[#allocation2 + $0x9] sm:$0xff]
      %v1446 = vld [vmem:[#allocation2 + $0x11] sm:$0xff]
      %v1447 = vld [vmem:[#allocation2 + $0x29] sm:$0xff]
      %v1448 = vld [vmem:[#allocation2 + $0x31] sm:$0xff]
      %v1449 = vld [vmem:[#allocation2 + $0x49] sm:$0xff]
      %v1450 = vld [vmem:[#allocation2 + $0x51] sm:$0xff]
      %v1451 = vld [vmem:[#allocation2 + $0x69] sm:$0xff]
      %v1452 = vld [vmem:[#allocation2 + $0x71] sm:$0xff]
      %v1453 = vld [vmem:[#allocation2 + $0x89] sm:$0xff]
      %v1454 = vld [vmem:[#allocation2 + $0x91] sm:$0xff]
      %v1455 = vld [vmem:[#allocation2 + $0xa9] sm:$0xff]
      %v1456 = vld [vmem:[#allocation2 + $0xb1] sm:$0xff]
      %v1457 = vld [vmem:[#allocation2 + $0xc9] sm:$0xff]
      %v1458 = vld [vmem:[#allocation2 + $0xd1] sm:$0xff]
      %v1459 = vld [vmem:[#allocation2 + $0xe9] sm:$0xff]
      %v1460 = vld [vmem:[#allocation2 + $0xf1] sm:$0xff]
      %v1461 = vld [vmem:[#allocation2 + $0x109] sm:$0xff]
      %v1462 = vld [vmem:[#allocation2 + $0x111] sm:$0xff]
      %v1463 = vld [vmem:[#allocation2 + $0x129] sm:$0xff]
      %v1464 = vld [vmem:[#allocation2 + $0x131] sm:$0xff]
      %v1465 = vld [vmem:[#allocation2 + $0x149] sm:$0xff]
      %v1466 = vld [vmem:[#allocation2 + $0x151] sm:$0xff]
      %v1467 = vld [vmem:[#allocation2 + $0x169] sm:$0xff]
      %v1468 = vld [vmem:[#allocation2 + $0x171] sm:$0xff]
      %v1469 = vld [vmem:[#allocation2 + $0x189] sm:$0xff]
      %v1470 = vld [vmem:[#allocation2 + $0x191] sm:$0xff]
      %v1471 = vld [vmem:[#allocation2 + $0x1a9] sm:$0xff]
      %v1472 = vld [vmem:[#allocation2 + $0x1b1] sm:$0xff]
      %v1473 = vld [vmem:[#allocation2 + $0x1c9] sm:$0xff]
      %v1474 = vld [vmem:[#allocation2 + $0x1d1] sm:$0xff]
      %v1475 = vld [vmem:[#allocation2 + $0x1e9] sm:$0xff]
      %v1476 = vld [vmem:[#allocation2 + $0x1f1] sm:$0xff]
      %v1477 = vld [vmem:[#allocation2 + $0x209] sm:$0xff]
      %v1478 = vld [vmem:[#allocation2 + $0x211] sm:$0xff]
      %v1479 = vld [vmem:[#allocation2 + $0x229] sm:$0xff]
      %v1480 = vld [vmem:[#allocation2 + $0x231] sm:$0xff]
      %v1481 = vld [vmem:[#allocation2 + $0x249] sm:$0xff]
      %v1482 = vld [vmem:[#allocation2 + $0x251] sm:$0xff]
      %v1483 = vld [vmem:[#allocation2 + $0x269] sm:$0xff]
      %v1484 = vld [vmem:[#allocation2 + $0x271] sm:$0xff]
      %v1485 = vld [vmem:[%s185 + $0x3] sm:$0x1]
      %v1486 = vlaneseq
      %v1487 = vshrl.u32 %v1486, 7
      %v1488 = vsub.s32 0, %v1487
      %v1489 = vrot.slane %v1485, %v1488
      %v1490 = vmul.f32 %v1445, %v1489
      %v1491 = vmul.f32 %v1446, %v1489
      %v1492 = vmul.f32 %v1447, %v1489
      %v1493 = vmul.f32 %v1448, %v1489
      %v1494 = vmul.f32 %v1449, %v1489
      %v1495 = vmul.f32 %v1450, %v1489
      %v1496 = vmul.f32 %v1451, %v1489
      %v1497 = vmul.f32 %v1452, %v1489
      %v1498 = vmul.f32 %v1453, %v1489
      %v1499 = vmul.f32 %v1454, %v1489
      %v1500 = vmul.f32 %v1455, %v1489
      %v1501 = vmul.f32 %v1456, %v1489
      %v1502 = vmul.f32 %v1457, %v1489
      %v1503 = vmul.f32 %v1458, %v1489
      %v1504 = vmul.f32 %v1459, %v1489
      %v1505 = vmul.f32 %v1460, %v1489
      %v1506 = vmul.f32 %v1461, %v1489
      %v1507 = vmul.f32 %v1462, %v1489
      %v1508 = vmul.f32 %v1463, %v1489
      %v1509 = vmul.f32 %v1464, %v1489
      %v1510 = vmul.f32 %v1465, %v1489
      %v1511 = vmul.f32 %v1466, %v1489
      %v1512 = vmul.f32 %v1467, %v1489
      %v1513 = vmul.f32 %v1468, %v1489
      %v1514 = vmul.f32 %v1469, %v1489
      %v1515 = vmul.f32 %v1470, %v1489
      %v1516 = vmul.f32 %v1471, %v1489
      %v1517 = vmul.f32 %v1472, %v1489
      %v1518 = vmul.f32 %v1473, %v1489
      %v1519 = vmul.f32 %v1474, %v1489
      %v1520 = vmul.f32 %v1475, %v1489
      %v1521 = vmul.f32 %v1476, %v1489
      %v1522 = vld [vmem:[%s395 + $0x3] sm:$0x1]
      %v1523 = vlaneseq
      %v1524 = vshrl.u32 %v1523, 7
      %v1525 = vsub.s32 0, %v1524
      %v1526 = vrot.slane %v1522, %v1525
      %v1527 = vmul.f32 %v1447, %v1526
      %v1528 = vmul.f32 %v1448, %v1526
      %v1529 = vmul.f32 %v1449, %v1526
      %v1530 = vmul.f32 %v1450, %v1526
      %v1531 = vmul.f32 %v1451, %v1526
      %v1532 = vmul.f32 %v1452, %v1526
      %v1533 = vmul.f32 %v1453, %v1526
      %v1534 = vmul.f32 %v1454, %v1526
      %v1535 = vmul.f32 %v1455, %v1526
      %v1536 = vmul.f32 %v1456, %v1526
      %v1537 = vmul.f32 %v1457, %v1526
      %v1538 = vmul.f32 %v1458, %v1526
      %v1539 = vmul.f32 %v1459, %v1526
      %v1540 = vmul.f32 %v1460, %v1526
      %v1541 = vmul.f32 %v1461, %v1526
      %v1542 = vmul.f32 %v1462, %v1526
      %v1543 = vmul.f32 %v1463, %v1526
      %v1544 = vmul.f32 %v1464, %v1526
      %v1545 = vmul.f32 %v1465, %v1526
      %v1546 = vmul.f32 %v1466, %v1526
      %v1547 = vmul.f32 %v1467, %v1526
      %v1548 = vmul.f32 %v1468, %v1526
      %v1549 = vmul.f32 %v1469, %v1526
      %v1550 = vmul.f32 %v1470, %v1526
      %v1551 = vmul.f32 %v1471, %v1526
      %v1552 = vmul.f32 %v1472, %v1526
      %v1553 = vmul.f32 %v1473, %v1526
      %v1554 = vmul.f32 %v1474, %v1526
      %v1555 = vmul.f32 %v1475, %v1526
      %v1556 = vmul.f32 %v1476, %v1526
      %v1557 = vmul.f32 %v1477, %v1526
      %v1558 = vmul.f32 %v1478, %v1526
      %v1559 = vadd.f32 %v1490, %v1527
      %v1560 = vadd.f32 %v1491, %v1528
      %v1561 = vadd.f32 %v1492, %v1529
      %v1562 = vadd.f32 %v1493, %v1530
      %v1563 = vadd.f32 %v1494, %v1531
      %v1564 = vadd.f32 %v1495, %v1532
      %v1565 = vadd.f32 %v1496, %v1533
      %v1566 = vadd.f32 %v1497, %v1534
      %v1567 = vadd.f32 %v1498, %v1535
      %v1568 = vadd.f32 %v1499, %v1536
      %v1569 = vadd.f32 %v1500, %v1537
      %v1570 = vadd.f32 %v1501, %v1538
      %v1571 = vadd.f32 %v1502, %v1539
      %v1572 = vadd.f32 %v1503, %v1540
      %v1573 = vadd.f32 %v1504, %v1541
      %v1574 = vadd.f32 %v1505, %v1542
      %v1575 = vadd.f32 %v1506, %v1543
      %v1576 = vadd.f32 %v1507, %v1544
      %v1577 = vadd.f32 %v1508, %v1545
      %v1578 = vadd.f32 %v1509, %v1546
      %v1579 = vadd.f32 %v1510, %v1547
      %v1580 = vadd.f32 %v1511, %v1548
      %v1581 = vadd.f32 %v1512, %v1549
      %v1582 = vadd.f32 %v1513, %v1550
      %v1583 = vadd.f32 %v1514, %v1551
      %v1584 = vadd.f32 %v1515, %v1552
      %v1585 = vadd.f32 %v1516, %v1553
      %v1586 = vadd.f32 %v1517, %v1554
      %v1587 = vadd.f32 %v1518, %v1555
      %v1588 = vadd.f32 %v1519, %v1556
      %v1589 = vadd.f32 %v1520, %v1557
      %v1590 = vadd.f32 %v1521, %v1558
      %v1591 = vld [vmem:[%s465 + $0x3] sm:$0x1]
      %v1592 = vlaneseq
      %v1593 = vshrl.u32 %v1592, 7
      %v1594 = vsub.s32 0, %v1593
      %v1595 = vrot.slane %v1591, %v1594
      %v1596 = vmul.f32 %v1449, %v1595
      %v1597 = vmul.f32 %v1450, %v1595
      %v1598 = vmul.f32 %v1451, %v1595
      %v1599 = vmul.f32 %v1452, %v1595
      %v1600 = vmul.f32 %v1453, %v1595
      %v1601 = vmul.f32 %v1454, %v1595
      %v1602 = vmul.f32 %v1455, %v1595
      %v1603 = vmul.f32 %v1456, %v1595
      %v1604 = vmul.f32 %v1457, %v1595
      %v1605 = vmul.f32 %v1458, %v1595
      %v1606 = vmul.f32 %v1459, %v1595
      %v1607 = vmul.f32 %v1460, %v1595
      %v1608 = vmul.f32 %v1461, %v1595
      %v1609 = vmul.f32 %v1462, %v1595
      %v1610 = vmul.f32 %v1463, %v1595
      %v1611 = vmul.f32 %v1464, %v1595
      %v1612 = vmul.f32 %v1465, %v1595
      %v1613 = vmul.f32 %v1466, %v1595
      %v1614 = vmul.f32 %v1467, %v1595
      %v1615 = vmul.f32 %v1468, %v1595
      %v1616 = vmul.f32 %v1469, %v1595
      %v1617 = vmul.f32 %v1470, %v1595
      %v1618 = vmul.f32 %v1471, %v1595
      %v1619 = vmul.f32 %v1472, %v1595
      %v1620 = vmul.f32 %v1473, %v1595
      %v1621 = vmul.f32 %v1474, %v1595
      %v1622 = vmul.f32 %v1475, %v1595
      %v1623 = vmul.f32 %v1476, %v1595
      %v1624 = vmul.f32 %v1477, %v1595
      %v1625 = vmul.f32 %v1478, %v1595
      %v1626 = vmul.f32 %v1479, %v1595
      %v1627 = vmul.f32 %v1480, %v1595
      %v1628 = vadd.f32 %v1559, %v1596
      %v1629 = vadd.f32 %v1560, %v1597
      %v1630 = vadd.f32 %v1561, %v1598
      %v1631 = vadd.f32 %v1562, %v1599
      %v1632 = vadd.f32 %v1563, %v1600
      %v1633 = vadd.f32 %v1564, %v1601
      %v1634 = vadd.f32 %v1565, %v1602
      %v1635 = vadd.f32 %v1566, %v1603
      %v1636 = vadd.f32 %v1567, %v1604
      %v1637 = vadd.f32 %v1568, %v1605
      %v1638 = vadd.f32 %v1569, %v1606
      %v1639 = vadd.f32 %v1570, %v1607
      %v1640 = vadd.f32 %v1571, %v1608
      %v1641 = vadd.f32 %v1572, %v1609
      %v1642 = vadd.f32 %v1573, %v1610
      %v1643 = vadd.f32 %v1574, %v1611
      %v1644 = vadd.f32 %v1575, %v1612
      %v1645 = vadd.f32 %v1576, %v1613
      %v1646 = vadd.f32 %v1577, %v1614
      %v1647 = vadd.f32 %v1578, %v1615
      %v1648 = vadd.f32 %v1579, %v1616
      %v1649 = vadd.f32 %v1580, %v1617
      %v1650 = vadd.f32 %v1581, %v1618
      %v1651 = vadd.f32 %v1582, %v1619
      %v1652 = vadd.f32 %v1583, %v1620
      %v1653 = vadd.f32 %v1584, %v1621
      %v1654 = vadd.f32 %v1585, %v1622
      %v1655 = vadd.f32 %v1586, %v1623
      %v1656 = vadd.f32 %v1587, %v1624
      %v1657 = vadd.f32 %v1588, %v1625
      %v1658 = vadd.f32 %v1589, %v1626
      %v1659 = vadd.f32 %v1590, %v1627
      %v1660 = vld [vmem:[%s535 + $0x3] sm:$0x1]
      %v1661 = vlaneseq
      %v1662 = vshrl.u32 %v1661, 7
      %v1663 = vsub.s32 0, %v1662
      %v1664 = vrot.slane %v1660, %v1663
      %v1665 = vmul.f32 %v1451, %v1664
      %v1666 = vmul.f32 %v1452, %v1664
      %v1667 = vmul.f32 %v1453, %v1664
      %v1668 = vmul.f32 %v1454, %v1664
      %v1669 = vmul.f32 %v1455, %v1664
      %v1670 = vmul.f32 %v1456, %v1664
      %v1671 = vmul.f32 %v1457, %v1664
      %v1672 = vmul.f32 %v1458, %v1664
      %v1673 = vmul.f32 %v1459, %v1664
      %v1674 = vmul.f32 %v1460, %v1664
      %v1675 = vmul.f32 %v1461, %v1664
      %v1676 = vmul.f32 %v1462, %v1664
      %v1677 = vmul.f32 %v1463, %v1664
      %v1678 = vmul.f32 %v1464, %v1664
      %v1679 = vmul.f32 %v1465, %v1664
      %v1680 = vmul.f32 %v1466, %v1664
      %v1681 = vmul.f32 %v1467, %v1664
      %v1682 = vmul.f32 %v1468, %v1664
      %v1683 = vmul.f32 %v1469, %v1664
      %v1684 = vmul.f32 %v1470, %v1664
      %v1685 = vmul.f32 %v1471, %v1664
      %v1686 = vmul.f32 %v1472, %v1664
      %v1687 = vmul.f32 %v1473, %v1664
      %v1688 = vmul.f32 %v1474, %v1664
      %v1689 = vmul.f32 %v1475, %v1664
      %v1690 = vmul.f32 %v1476, %v1664
      %v1691 = vmul.f32 %v1477, %v1664
      %v1692 = vmul.f32 %v1478, %v1664
      %v1693 = vmul.f32 %v1479, %v1664
      %v1694 = vmul.f32 %v1480, %v1664
      %v1695 = vmul.f32 %v1481, %v1664
      %v1696 = vmul.f32 %v1482, %v1664
      %v1697 = vadd.f32 %v1628, %v1665
      %v1698 = vadd.f32 %v1629, %v1666
      %v1699 = vadd.f32 %v1630, %v1667
      %v1700 = vadd.f32 %v1631, %v1668
      %v1701 = vadd.f32 %v1632, %v1669
      %v1702 = vadd.f32 %v1633, %v1670
      %v1703 = vadd.f32 %v1634, %v1671
      %v1704 = vadd.f32 %v1635, %v1672
      %v1705 = vadd.f32 %v1636, %v1673
      %v1706 = vadd.f32 %v1637, %v1674
      %v1707 = vadd.f32 %v1638, %v1675
      %v1708 = vadd.f32 %v1639, %v1676
      %v1709 = vadd.f32 %v1640, %v1677
      %v1710 = vadd.f32 %v1641, %v1678
      %v1711 = vadd.f32 %v1642, %v1679
      %v1712 = vadd.f32 %v1643, %v1680
      %v1713 = vadd.f32 %v1644, %v1681
      %v1714 = vadd.f32 %v1645, %v1682
      %v1715 = vadd.f32 %v1646, %v1683
      %v1716 = vadd.f32 %v1647, %v1684
      %v1717 = vadd.f32 %v1648, %v1685
      %v1718 = vadd.f32 %v1649, %v1686
      %v1719 = vadd.f32 %v1650, %v1687
      %v1720 = vadd.f32 %v1651, %v1688
      %v1721 = vadd.f32 %v1652, %v1689
      %v1722 = vadd.f32 %v1653, %v1690
      %v1723 = vadd.f32 %v1654, %v1691
      %v1724 = vadd.f32 %v1655, %v1692
      %v1725 = vadd.f32 %v1656, %v1693
      %v1726 = vadd.f32 %v1657, %v1694
      %v1727 = vadd.f32 %v1658, %v1695
      %v1728 = vadd.f32 %v1659, %v1696
      %v1729 = vld [vmem:[%s605 + $0x3] sm:$0x1]
      %v1730 = vlaneseq
      %v1731 = vshrl.u32 %v1730, 7
      %v1732 = vsub.s32 0, %v1731
      %v1733 = vrot.slane %v1729, %v1732
      %v1734 = vmul.f32 %v1453, %v1733
      %v1735 = vmul.f32 %v1454, %v1733
      %v1736 = vmul.f32 %v1455, %v1733
      %v1737 = vmul.f32 %v1456, %v1733
      %v1738 = vmul.f32 %v1457, %v1733
      %v1739 = vmul.f32 %v1458, %v1733
      %v1740 = vmul.f32 %v1459, %v1733
      %v1741 = vmul.f32 %v1460, %v1733
      %v1742 = vmul.f32 %v1461, %v1733
      %v1743 = vmul.f32 %v1462, %v1733
      %v1744 = vmul.f32 %v1463, %v1733
      %v1745 = vmul.f32 %v1464, %v1733
      %v1746 = vmul.f32 %v1465, %v1733
      %v1747 = vmul.f32 %v1466, %v1733
      %v1748 = vmul.f32 %v1467, %v1733
      %v1749 = vmul.f32 %v1468, %v1733
      %v1750 = vmul.f32 %v1469, %v1733
      %v1751 = vmul.f32 %v1470, %v1733
      %v1752 = vmul.f32 %v1471, %v1733
      %v1753 = vmul.f32 %v1472, %v1733
      %v1754 = vmul.f32 %v1473, %v1733
      %v1755 = vmul.f32 %v1474, %v1733
      %v1756 = vmul.f32 %v1475, %v1733
      %v1757 = vmul.f32 %v1476, %v1733
      %v1758 = vmul.f32 %v1477, %v1733
      %v1759 = vmul.f32 %v1478, %v1733
      %v1760 = vmul.f32 %v1479, %v1733
      %v1761 = vmul.f32 %v1480, %v1733
      %v1762 = vmul.f32 %v1481, %v1733
      %v1763 = vmul.f32 %v1482, %v1733
      %v1764 = vmul.f32 %v1483, %v1733
      %v1765 = vmul.f32 %v1484, %v1733
      %v1766 = vadd.f32 %v1697, %v1734
      %v1767 = vadd.f32 %v1698, %v1735
      %v1768 = vadd.f32 %v1699, %v1736
      %v1769 = vadd.f32 %v1700, %v1737
      %v1770 = vadd.f32 %v1701, %v1738
      %v1771 = vadd.f32 %v1702, %v1739
      %v1772 = vadd.f32 %v1703, %v1740
      %v1773 = vadd.f32 %v1704, %v1741
      %v1774 = vadd.f32 %v1705, %v1742
      %v1775 = vadd.f32 %v1706, %v1743
      %v1776 = vadd.f32 %v1707, %v1744
      %v1777 = vadd.f32 %v1708, %v1745
      %v1778 = vadd.f32 %v1709, %v1746
      %v1779 = vadd.f32 %v1710, %v1747
      %v1780 = vadd.f32 %v1711, %v1748
      %v1781 = vadd.f32 %v1712, %v1749
      %v1782 = vadd.f32 %v1713, %v1750
      %v1783 = vadd.f32 %v1714, %v1751
      %v1784 = vadd.f32 %v1715, %v1752
      %v1785 = vadd.f32 %v1716, %v1753
      %v1786 = vadd.f32 %v1717, %v1754
      %v1787 = vadd.f32 %v1718, %v1755
      %v1788 = vadd.f32 %v1719, %v1756
      %v1789 = vadd.f32 %v1720, %v1757
      %v1790 = vadd.f32 %v1721, %v1758
      %v1791 = vadd.f32 %v1722, %v1759
      %v1792 = vadd.f32 %v1723, %v1760
      %v1793 = vadd.f32 %v1724, %v1761
      %v1794 = vadd.f32 %v1725, %v1762
      %v1795 = vadd.f32 %v1726, %v1763
      %v1796 = vadd.f32 %v1727, %v1764
      %v1797 = vadd.f32 %v1728, %v1765
      %v1798 = vadd.f32 %v1413, %v1766
      %v1799 = vadd.f32 %v1414, %v1767
      %v1800 = vadd.f32 %v1415, %v1768
      %v1801 = vadd.f32 %v1416, %v1769
      %v1802 = vadd.f32 %v1417, %v1770
      %v1803 = vadd.f32 %v1418, %v1771
      %v1804 = vadd.f32 %v1419, %v1772
      %v1805 = vadd.f32 %v1420, %v1773
      %v1806 = vadd.f32 %v1421, %v1774
      %v1807 = vadd.f32 %v1422, %v1775
      %v1808 = vadd.f32 %v1423, %v1776
      %v1809 = vadd.f32 %v1424, %v1777
      %v1810 = vadd.f32 %v1425, %v1778
      %v1811 = vadd.f32 %v1426, %v1779
      %v1812 = vadd.f32 %v1427, %v1780
      %v1813 = vadd.f32 %v1428, %v1781
      %v1814 = vadd.f32 %v1429, %v1782
      %v1815 = vadd.f32 %v1430, %v1783
      %v1816 = vadd.f32 %v1431, %v1784
      %v1817 = vadd.f32 %v1432, %v1785
      %v1818 = vadd.f32 %v1433, %v1786
      %v1819 = vadd.f32 %v1434, %v1787
      %v1820 = vadd.f32 %v1435, %v1788
      %v1821 = vadd.f32 %v1436, %v1789
      %v1822 = vadd.f32 %v1437, %v1790
      %v1823 = vadd.f32 %v1438, %v1791
      %v1824 = vadd.f32 %v1439, %v1792
      %v1825 = vadd.f32 %v1440, %v1793
      %v1826 = vadd.f32 %v1441, %v1794
      %v1827 = vadd.f32 %v1442, %v1795
      %v1828 = vadd.f32 %v1443, %v1796
      %v1829 = vadd.f32 %v1444, %v1797
      %v1830 = vld [vmem:[#allocation2 + $0xa] sm:$0xff]
      %v1831 = vld [vmem:[#allocation2 + $0x12] sm:$0xff]
      %v1832 = vld [vmem:[#allocation2 + $0x2a] sm:$0xff]
      %v1833 = vld [vmem:[#allocation2 + $0x32] sm:$0xff]
      %v1834 = vld [vmem:[#allocation2 + $0x4a] sm:$0xff]
      %v1835 = vld [vmem:[#allocation2 + $0x52] sm:$0xff]
      %v1836 = vld [vmem:[#allocation2 + $0x6a] sm:$0xff]
      %v1837 = vld [vmem:[#allocation2 + $0x72] sm:$0xff]
      %v1838 = vld [vmem:[#allocation2 + $0x8a] sm:$0xff]
      %v1839 = vld [vmem:[#allocation2 + $0x92] sm:$0xff]
      %v1840 = vld [vmem:[#allocation2 + $0xaa] sm:$0xff]
      %v1841 = vld [vmem:[#allocation2 + $0xb2] sm:$0xff]
      %v1842 = vld [vmem:[#allocation2 + $0xca] sm:$0xff]
      %v1843 = vld [vmem:[#allocation2 + $0xd2] sm:$0xff]
      %v1844 = vld [vmem:[#allocation2 + $0xea] sm:$0xff]
      %v1845 = vld [vmem:[#allocation2 + $0xf2] sm:$0xff]
      %v1846 = vld [vmem:[#allocation2 + $0x10a] sm:$0xff]
      %v1847 = vld [vmem:[#allocation2 + $0x112] sm:$0xff]
      %v1848 = vld [vmem:[#allocation2 + $0x12a] sm:$0xff]
      %v1849 = vld [vmem:[#allocation2 + $0x132] sm:$0xff]
      %v1850 = vld [vmem:[#allocation2 + $0x14a] sm:$0xff]
      %v1851 = vld [vmem:[#allocation2 + $0x152] sm:$0xff]
      %v1852 = vld [vmem:[#allocation2 + $0x16a] sm:$0xff]
      %v1853 = vld [vmem:[#allocation2 + $0x172] sm:$0xff]
      %v1854 = vld [vmem:[#allocation2 + $0x18a] sm:$0xff]
      %v1855 = vld [vmem:[#allocation2 + $0x192] sm:$0xff]
      %v1856 = vld [vmem:[#allocation2 + $0x1aa] sm:$0xff]
      %v1857 = vld [vmem:[#allocation2 + $0x1b2] sm:$0xff]
      %v1858 = vld [vmem:[#allocation2 + $0x1ca] sm:$0xff]
      %v1859 = vld [vmem:[#allocation2 + $0x1d2] sm:$0xff]
      %v1860 = vld [vmem:[#allocation2 + $0x1ea] sm:$0xff]
      %v1861 = vld [vmem:[#allocation2 + $0x1f2] sm:$0xff]
      %v1862 = vld [vmem:[#allocation2 + $0x20a] sm:$0xff]
      %v1863 = vld [vmem:[#allocation2 + $0x212] sm:$0xff]
      %v1864 = vld [vmem:[#allocation2 + $0x22a] sm:$0xff]
      %v1865 = vld [vmem:[#allocation2 + $0x232] sm:$0xff]
      %v1866 = vld [vmem:[#allocation2 + $0x24a] sm:$0xff]
      %v1867 = vld [vmem:[#allocation2 + $0x252] sm:$0xff]
      %v1868 = vld [vmem:[#allocation2 + $0x26a] sm:$0xff]
      %v1869 = vld [vmem:[#allocation2 + $0x272] sm:$0xff]
      %v1870 = vld [vmem:[%s185 + $0x4] sm:$0x1]
      %v1871 = vlaneseq
      %v1872 = vshrl.u32 %v1871, 7
      %v1873 = vsub.s32 0, %v1872
      %v1874 = vrot.slane %v1870, %v1873
      %v1875 = vmul.f32 %v1830, %v1874
      %v1876 = vmul.f32 %v1831, %v1874
      %v1877 = vmul.f32 %v1832, %v1874
      %v1878 = vmul.f32 %v1833, %v1874
      %v1879 = vmul.f32 %v1834, %v1874
      %v1880 = vmul.f32 %v1835, %v1874
      %v1881 = vmul.f32 %v1836, %v1874
      %v1882 = vmul.f32 %v1837, %v1874
      %v1883 = vmul.f32 %v1838, %v1874
      %v1884 = vmul.f32 %v1839, %v1874
      %v1885 = vmul.f32 %v1840, %v1874
      %v1886 = vmul.f32 %v1841, %v1874
      %v1887 = vmul.f32 %v1842, %v1874
      %v1888 = vmul.f32 %v1843, %v1874
      %v1889 = vmul.f32 %v1844, %v1874
      %v1890 = vmul.f32 %v1845, %v1874
      %v1891 = vmul.f32 %v1846, %v1874
      %v1892 = vmul.f32 %v1847, %v1874
      %v1893 = vmul.f32 %v1848, %v1874
      %v1894 = vmul.f32 %v1849, %v1874
      %v1895 = vmul.f32 %v1850, %v1874
      %v1896 = vmul.f32 %v1851, %v1874
      %v1897 = vmul.f32 %v1852, %v1874
      %v1898 = vmul.f32 %v1853, %v1874
      %v1899 = vmul.f32 %v1854, %v1874
      %v1900 = vmul.f32 %v1855, %v1874
      %v1901 = vmul.f32 %v1856, %v1874
      %v1902 = vmul.f32 %v1857, %v1874
      %v1903 = vmul.f32 %v1858, %v1874
      %v1904 = vmul.f32 %v1859, %v1874
      %v1905 = vmul.f32 %v1860, %v1874
      %v1906 = vmul.f32 %v1861, %v1874
      %v1907 = vld [vmem:[%s395 + $0x4] sm:$0x1]
      %v1908 = vlaneseq
      %v1909 = vshrl.u32 %v1908, 7
      %v1910 = vsub.s32 0, %v1909
      %v1911 = vrot.slane %v1907, %v1910
      %v1912 = vmul.f32 %v1832, %v1911
      %v1913 = vmul.f32 %v1833, %v1911
      %v1914 = vmul.f32 %v1834, %v1911
      %v1915 = vmul.f32 %v1835, %v1911
      %v1916 = vmul.f32 %v1836, %v1911
      %v1917 = vmul.f32 %v1837, %v1911
      %v1918 = vmul.f32 %v1838, %v1911
      %v1919 = vmul.f32 %v1839, %v1911
      %v1920 = vmul.f32 %v1840, %v1911
      %v1921 = vmul.f32 %v1841, %v1911
      %v1922 = vmul.f32 %v1842, %v1911
      %v1923 = vmul.f32 %v1843, %v1911
      %v1924 = vmul.f32 %v1844, %v1911
      %v1925 = vmul.f32 %v1845, %v1911
      %v1926 = vmul.f32 %v1846, %v1911
      %v1927 = vmul.f32 %v1847, %v1911
      %v1928 = vmul.f32 %v1848, %v1911
      %v1929 = vmul.f32 %v1849, %v1911
      %v1930 = vmul.f32 %v1850, %v1911
      %v1931 = vmul.f32 %v1851, %v1911
      %v1932 = vmul.f32 %v1852, %v1911
      %v1933 = vmul.f32 %v1853, %v1911
      %v1934 = vmul.f32 %v1854, %v1911
      %v1935 = vmul.f32 %v1855, %v1911
      %v1936 = vmul.f32 %v1856, %v1911
      %v1937 = vmul.f32 %v1857, %v1911
      %v1938 = vmul.f32 %v1858, %v1911
      %v1939 = vmul.f32 %v1859, %v1911
      %v1940 = vmul.f32 %v1860, %v1911
      %v1941 = vmul.f32 %v1861, %v1911
      %v1942 = vmul.f32 %v1862, %v1911
      %v1943 = vmul.f32 %v1863, %v1911
      %v1944 = vadd.f32 %v1875, %v1912
      %v1945 = vadd.f32 %v1876, %v1913
      %v1946 = vadd.f32 %v1877, %v1914
      %v1947 = vadd.f32 %v1878, %v1915
      %v1948 = vadd.f32 %v1879, %v1916
      %v1949 = vadd.f32 %v1880, %v1917
      %v1950 = vadd.f32 %v1881, %v1918
      %v1951 = vadd.f32 %v1882, %v1919
      %v1952 = vadd.f32 %v1883, %v1920
      %v1953 = vadd.f32 %v1884, %v1921
      %v1954 = vadd.f32 %v1885, %v1922
      %v1955 = vadd.f32 %v1886, %v1923
      %v1956 = vadd.f32 %v1887, %v1924
      %v1957 = vadd.f32 %v1888, %v1925
      %v1958 = vadd.f32 %v1889, %v1926
      %v1959 = vadd.f32 %v1890, %v1927
      %v1960 = vadd.f32 %v1891, %v1928
      %v1961 = vadd.f32 %v1892, %v1929
      %v1962 = vadd.f32 %v1893, %v1930
      %v1963 = vadd.f32 %v1894, %v1931
      %v1964 = vadd.f32 %v1895, %v1932
      %v1965 = vadd.f32 %v1896, %v1933
      %v1966 = vadd.f32 %v1897, %v1934
      %v1967 = vadd.f32 %v1898, %v1935
      %v1968 = vadd.f32 %v1899, %v1936
      %v1969 = vadd.f32 %v1900, %v1937
      %v1970 = vadd.f32 %v1901, %v1938
      %v1971 = vadd.f32 %v1902, %v1939
      %v1972 = vadd.f32 %v1903, %v1940
      %v1973 = vadd.f32 %v1904, %v1941
      %v1974 = vadd.f32 %v1905, %v1942
      %v1975 = vadd.f32 %v1906, %v1943
      %v1976 = vld [vmem:[%s465 + $0x4] sm:$0x1]
      %v1977 = vlaneseq
      %v1978 = vshrl.u32 %v1977, 7
      %v1979 = vsub.s32 0, %v1978
      %v1980 = vrot.slane %v1976, %v1979
      %v1981 = vmul.f32 %v1834, %v1980
      %v1982 = vmul.f32 %v1835, %v1980
      %v1983 = vmul.f32 %v1836, %v1980
      %v1984 = vmul.f32 %v1837, %v1980
      %v1985 = vmul.f32 %v1838, %v1980
      %v1986 = vmul.f32 %v1839, %v1980
      %v1987 = vmul.f32 %v1840, %v1980
      %v1988 = vmul.f32 %v1841, %v1980
      %v1989 = vmul.f32 %v1842, %v1980
      %v1990 = vmul.f32 %v1843, %v1980
      %v1991 = vmul.f32 %v1844, %v1980
      %v1992 = vmul.f32 %v1845, %v1980
      %v1993 = vmul.f32 %v1846, %v1980
      %v1994 = vmul.f32 %v1847, %v1980
      %v1995 = vmul.f32 %v1848, %v1980
      %v1996 = vmul.f32 %v1849, %v1980
      %v1997 = vmul.f32 %v1850, %v1980
      %v1998 = vmul.f32 %v1851, %v1980
      %v1999 = vmul.f32 %v1852, %v1980
      %v2000 = vmul.f32 %v1853, %v1980
      %v2001 = vmul.f32 %v1854, %v1980
      %v2002 = vmul.f32 %v1855, %v1980
      %v2003 = vmul.f32 %v1856, %v1980
      %v2004 = vmul.f32 %v1857, %v1980
      %v2005 = vmul.f32 %v1858, %v1980
      %v2006 = vmul.f32 %v1859, %v1980
      %v2007 = vmul.f32 %v1860, %v1980
      %v2008 = vmul.f32 %v1861, %v1980
      %v2009 = vmul.f32 %v1862, %v1980
      %v2010 = vmul.f32 %v1863, %v1980
      %v2011 = vmul.f32 %v1864, %v1980
      %v2012 = vmul.f32 %v1865, %v1980
      %v2013 = vadd.f32 %v1944, %v1981
      %v2014 = vadd.f32 %v1945, %v1982
      %v2015 = vadd.f32 %v1946, %v1983
      %v2016 = vadd.f32 %v1947, %v1984
      %v2017 = vadd.f32 %v1948, %v1985
      %v2018 = vadd.f32 %v1949, %v1986
      %v2019 = vadd.f32 %v1950, %v1987
      %v2020 = vadd.f32 %v1951, %v1988
      %v2021 = vadd.f32 %v1952, %v1989
      %v2022 = vadd.f32 %v1953, %v1990
      %v2023 = vadd.f32 %v1954, %v1991
      %v2024 = vadd.f32 %v1955, %v1992
      %v2025 = vadd.f32 %v1956, %v1993
      %v2026 = vadd.f32 %v1957, %v1994
      %v2027 = vadd.f32 %v1958, %v1995
      %v2028 = vadd.f32 %v1959, %v1996
      %v2029 = vadd.f32 %v1960, %v1997
      %v2030 = vadd.f32 %v1961, %v1998
      %v2031 = vadd.f32 %v1962, %v1999
      %v2032 = vadd.f32 %v1963, %v2000
      %v2033 = vadd.f32 %v1964, %v2001
      %v2034 = vadd.f32 %v1965, %v2002
      %v2035 = vadd.f32 %v1966, %v2003
      %v2036 = vadd.f32 %v1967, %v2004
      %v2037 = vadd.f32 %v1968, %v2005
      %v2038 = vadd.f32 %v1969, %v2006
      %v2039 = vadd.f32 %v1970, %v2007
      %v2040 = vadd.f32 %v1971, %v2008
      %v2041 = vadd.f32 %v1972, %v2009
      %v2042 = vadd.f32 %v1973, %v2010
      %v2043 = vadd.f32 %v1974, %v2011
      %v2044 = vadd.f32 %v1975, %v2012
      %v2045 = vld [vmem:[%s535 + $0x4] sm:$0x1]
      %v2046 = vlaneseq
      %v2047 = vshrl.u32 %v2046, 7
      %v2048 = vsub.s32 0, %v2047
      %v2049 = vrot.slane %v2045, %v2048
      %v2050 = vmul.f32 %v1836, %v2049
      %v2051 = vmul.f32 %v1837, %v2049
      %v2052 = vmul.f32 %v1838, %v2049
      %v2053 = vmul.f32 %v1839, %v2049
      %v2054 = vmul.f32 %v1840, %v2049
      %v2055 = vmul.f32 %v1841, %v2049
      %v2056 = vmul.f32 %v1842, %v2049
      %v2057 = vmul.f32 %v1843, %v2049
      %v2058 = vmul.f32 %v1844, %v2049
      %v2059 = vmul.f32 %v1845, %v2049
      %v2060 = vmul.f32 %v1846, %v2049
      %v2061 = vmul.f32 %v1847, %v2049
      %v2062 = vmul.f32 %v1848, %v2049
      %v2063 = vmul.f32 %v1849, %v2049
      %v2064 = vmul.f32 %v1850, %v2049
      %v2065 = vmul.f32 %v1851, %v2049
      %v2066 = vmul.f32 %v1852, %v2049
      %v2067 = vmul.f32 %v1853, %v2049
      %v2068 = vmul.f32 %v1854, %v2049
      %v2069 = vmul.f32 %v1855, %v2049
      %v2070 = vmul.f32 %v1856, %v2049
      %v2071 = vmul.f32 %v1857, %v2049
      %v2072 = vmul.f32 %v1858, %v2049
      %v2073 = vmul.f32 %v1859, %v2049
      %v2074 = vmul.f32 %v1860, %v2049
      %v2075 = vmul.f32 %v1861, %v2049
      %v2076 = vmul.f32 %v1862, %v2049
      %v2077 = vmul.f32 %v1863, %v2049
      %v2078 = vmul.f32 %v1864, %v2049
      %v2079 = vmul.f32 %v1865, %v2049
      %v2080 = vmul.f32 %v1866, %v2049
      %v2081 = vmul.f32 %v1867, %v2049
      %v2082 = vadd.f32 %v2013, %v2050
      %v2083 = vadd.f32 %v2014, %v2051
      %v2084 = vadd.f32 %v2015, %v2052
      %v2085 = vadd.f32 %v2016, %v2053
      %v2086 = vadd.f32 %v2017, %v2054
      %v2087 = vadd.f32 %v2018, %v2055
      %v2088 = vadd.f32 %v2019, %v2056
      %v2089 = vadd.f32 %v2020, %v2057
      %v2090 = vadd.f32 %v2021, %v2058
      %v2091 = vadd.f32 %v2022, %v2059
      %v2092 = vadd.f32 %v2023, %v2060
      %v2093 = vadd.f32 %v2024, %v2061
      %v2094 = vadd.f32 %v2025, %v2062
      %v2095 = vadd.f32 %v2026, %v2063
      %v2096 = vadd.f32 %v2027, %v2064
      %v2097 = vadd.f32 %v2028, %v2065
      %v2098 = vadd.f32 %v2029, %v2066
      %v2099 = vadd.f32 %v2030, %v2067
      %v2100 = vadd.f32 %v2031, %v2068
      %v2101 = vadd.f32 %v2032, %v2069
      %v2102 = vadd.f32 %v2033, %v2070
      %v2103 = vadd.f32 %v2034, %v2071
      %v2104 = vadd.f32 %v2035, %v2072
      %v2105 = vadd.f32 %v2036, %v2073
      %v2106 = vadd.f32 %v2037, %v2074
      %v2107 = vadd.f32 %v2038, %v2075
      %v2108 = vadd.f32 %v2039, %v2076
      %v2109 = vadd.f32 %v2040, %v2077
      %v2110 = vadd.f32 %v2041, %v2078
      %v2111 = vadd.f32 %v2042, %v2079
      %v2112 = vadd.f32 %v2043, %v2080
      %v2113 = vadd.f32 %v2044, %v2081
      %v2114 = vld [vmem:[%s605 + $0x4] sm:$0x1]
      %v2115 = vlaneseq
      %v2116 = vshrl.u32 %v2115, 7
      %v2117 = vsub.s32 0, %v2116
      %v2118 = vrot.slane %v2114, %v2117
      %v2119 = vmul.f32 %v1838, %v2118
      %v2120 = vmul.f32 %v1839, %v2118
      %v2121 = vmul.f32 %v1840, %v2118
      %v2122 = vmul.f32 %v1841, %v2118
      %v2123 = vmul.f32 %v1842, %v2118
      %v2124 = vmul.f32 %v1843, %v2118
      %v2125 = vmul.f32 %v1844, %v2118
      %v2126 = vmul.f32 %v1845, %v2118
      %v2127 = vmul.f32 %v1846, %v2118
      %v2128 = vmul.f32 %v1847, %v2118
      %v2129 = vmul.f32 %v1848, %v2118
      %v2130 = vmul.f32 %v1849, %v2118
      %v2131 = vmul.f32 %v1850, %v2118
      %v2132 = vmul.f32 %v1851, %v2118
      %v2133 = vmul.f32 %v1852, %v2118
      %v2134 = vmul.f32 %v1853, %v2118
      %v2135 = vmul.f32 %v1854, %v2118
      %v2136 = vmul.f32 %v1855, %v2118
      %v2137 = vmul.f32 %v1856, %v2118
      %v2138 = vmul.f32 %v1857, %v2118
      %v2139 = vmul.f32 %v1858, %v2118
      %v2140 = vmul.f32 %v1859, %v2118
      %v2141 = vmul.f32 %v1860, %v2118
      %v2142 = vmul.f32 %v1861, %v2118
      %v2143 = vmul.f32 %v1862, %v2118
      %v2144 = vmul.f32 %v1863, %v2118
      %v2145 = vmul.f32 %v1864, %v2118
      %v2146 = vmul.f32 %v1865, %v2118
      %v2147 = vmul.f32 %v1866, %v2118
      %v2148 = vmul.f32 %v1867, %v2118
      %v2149 = vmul.f32 %v1868, %v2118
      %v2150 = vmul.f32 %v1869, %v2118
      %v2151 = vadd.f32 %v2082, %v2119
      %v2152 = vadd.f32 %v2083, %v2120
      %v2153 = vadd.f32 %v2084, %v2121
      %v2154 = vadd.f32 %v2085, %v2122
      %v2155 = vadd.f32 %v2086, %v2123
      %v2156 = vadd.f32 %v2087, %v2124
      %v2157 = vadd.f32 %v2088, %v2125
      %v2158 = vadd.f32 %v2089, %v2126
      %v2159 = vadd.f32 %v2090, %v2127
      %v2160 = vadd.f32 %v2091, %v2128
      %v2161 = vadd.f32 %v2092, %v2129
      %v2162 = vadd.f32 %v2093, %v2130
      %v2163 = vadd.f32 %v2094, %v2131
      %v2164 = vadd.f32 %v2095, %v2132
      %v2165 = vadd.f32 %v2096, %v2133
      %v2166 = vadd.f32 %v2097, %v2134
      %v2167 = vadd.f32 %v2098, %v2135
      %v2168 = vadd.f32 %v2099, %v2136
      %v2169 = vadd.f32 %v2100, %v2137
      %v2170 = vadd.f32 %v2101, %v2138
      %v2171 = vadd.f32 %v2102, %v2139
      %v2172 = vadd.f32 %v2103, %v2140
      %v2173 = vadd.f32 %v2104, %v2141
      %v2174 = vadd.f32 %v2105, %v2142
      %v2175 = vadd.f32 %v2106, %v2143
      %v2176 = vadd.f32 %v2107, %v2144
      %v2177 = vadd.f32 %v2108, %v2145
      %v2178 = vadd.f32 %v2109, %v2146
      %v2179 = vadd.f32 %v2110, %v2147
      %v2180 = vadd.f32 %v2111, %v2148
      %v2181 = vadd.f32 %v2112, %v2149
      %v2182 = vadd.f32 %v2113, %v2150
      %v2183 = vadd.f32 %v1798, %v2151
      %v2184 = vadd.f32 %v1799, %v2152
      %v2185 = vadd.f32 %v1800, %v2153
      %v2186 = vadd.f32 %v1801, %v2154
      %v2187 = vadd.f32 %v1802, %v2155
      %v2188 = vadd.f32 %v1803, %v2156
      %v2189 = vadd.f32 %v1804, %v2157
      %v2190 = vadd.f32 %v1805, %v2158
      %v2191 = vadd.f32 %v1806, %v2159
      %v2192 = vadd.f32 %v1807, %v2160
      %v2193 = vadd.f32 %v1808, %v2161
      %v2194 = vadd.f32 %v1809, %v2162
      %v2195 = vadd.f32 %v1810, %v2163
      %v2196 = vadd.f32 %v1811, %v2164
      %v2197 = vadd.f32 %v1812, %v2165
      %v2198 = vadd.f32 %v1813, %v2166
      %v2199 = vadd.f32 %v1814, %v2167
      %v2200 = vadd.f32 %v1815, %v2168
      %v2201 = vadd.f32 %v1816, %v2169
      %v2202 = vadd.f32 %v1817, %v2170
      %v2203 = vadd.f32 %v1818, %v2171
      %v2204 = vadd.f32 %v1819, %v2172
      %v2205 = vadd.f32 %v1820, %v2173
      %v2206 = vadd.f32 %v1821, %v2174
      %v2207 = vadd.f32 %v1822, %v2175
      %v2208 = vadd.f32 %v1823, %v2176
      %v2209 = vadd.f32 %v1824, %v2177
      %v2210 = vadd.f32 %v1825, %v2178
      %v2211 = vadd.f32 %v1826, %v2179
      %v2212 = vadd.f32 %v1827, %v2180
      %v2213 = vadd.f32 %v1828, %v2181
      %v2214 = vadd.f32 %v1829, %v2182
      %2215 = vst.msk [vmem:[%s193] sm:$0xff] %vm194, %v2183
      %2216 = vst.msk [vmem:[%s193 + $0x8] sm:$0xff] %vm194, %v2184
      %2217 = vst.msk [vmem:[%s193 + $0x10] sm:$0xff] %vm194, %v2185
      %2218 = vst.msk [vmem:[%s193 + $0x18] sm:$0xff] %vm194, %v2186
      %2219 = vst.msk [vmem:[%s193 + $0x20] sm:$0xff] %vm194, %v2187
      %2220 = vst.msk [vmem:[%s193 + $0x28] sm:$0xff] %vm194, %v2188
      %2221 = vst.msk [vmem:[%s193 + $0x30] sm:$0xff] %vm194, %v2189
      %2222 = vst.msk [vmem:[%s193 + $0x38] sm:$0xff] %vm194, %v2190
      %2223 = vst.msk [vmem:[%s193 + $0x40] sm:$0xff] %vm194, %v2191
      %2224 = vst.msk [vmem:[%s193 + $0x48] sm:$0xff] %vm194, %v2192
      %2225 = vst.msk [vmem:[%s193 + $0x50] sm:$0xff] %vm194, %v2193
      %2226 = vst.msk [vmem:[%s193 + $0x58] sm:$0xff] %vm194, %v2194
      %2227 = vst.msk [vmem:[%s193 + $0x60] sm:$0xff] %vm194, %v2195
      %2228 = vst.msk [vmem:[%s193 + $0x68] sm:$0xff] %vm194, %v2196
      %2229 = vst.msk [vmem:[%s193 + $0x70] sm:$0xff] %vm194, %v2197
      %2230 = vst.msk [vmem:[%s193 + $0x78] sm:$0xff] %vm194, %v2198
      %2231 = vst.msk [vmem:[%s193 + $0x80] sm:$0xff] %vm194, %v2199
      %2232 = vst.msk [vmem:[%s193 + $0x88] sm:$0xff] %vm194, %v2200
      %2233 = vst.msk [vmem:[%s193 + $0x90] sm:$0xff] %vm194, %v2201
      %2234 = vst.msk [vmem:[%s193 + $0x98] sm:$0xff] %vm194, %v2202
      %2235 = vst.msk [vmem:[%s193 + $0xa0] sm:$0xff] %vm194, %v2203
      %2236 = vst.msk [vmem:[%s193 + $0xa8] sm:$0xff] %vm194, %v2204
      %2237 = vst.msk [vmem:[%s193 + $0xb0] sm:$0xff] %vm194, %v2205
      %2238 = vst.msk [vmem:[%s193 + $0xb8] sm:$0xff] %vm194, %v2206
      %2239 = vst.msk [vmem:[%s193 + $0xc0] sm:$0xff] %vm194, %v2207
      %2240 = vst.msk [vmem:[%s193 + $0xc8] sm:$0xff] %vm194, %v2208
      %2241 = vst.msk [vmem:[%s193 + $0xd0] sm:$0xff] %vm194, %v2209
      %2242 = vst.msk [vmem:[%s193 + $0xd8] sm:$0xff] %vm194, %v2210
      %2243 = vst.msk [vmem:[%s193 + $0xe0] sm:$0xff] %vm194, %v2211
      %2244 = vst.msk [vmem:[%s193 + $0xe8] sm:$0xff] %vm194, %v2212
      %2245 = vst.msk [vmem:[%s193 + $0xf0] sm:$0xff] %vm194, %v2213
      %2246 = vst.msk [vmem:[%s193 + $0xf8] sm:$0xff] %vm194, %v2214
      %p2247 = scmp.lt.s32.totalorder %s20, 1
      %s2248 = scalar_select %p2247, %s20, 1
      %p2249 = scmp.lt.s32.totalorder %s19, 0
      %s2250 = scalar_select %p2249, %s19, 0
      %s2251 = smul.addr %s2248, 32
      %s2252 = sadd.s32 %s2250, %s2251
      %s2253 = smul.addr %s2252, 8
      %s2254 = scalar_lea.vmem %s3, %s2253
      // Predicated region
      $region29: #{tpu_custom_call.1} parent=27 // pred_check
        %p2255 = pneg %p101
      $region30: #{tpu_custom_call.1} parent=27 // pred_check_branch
        %2257 = sbr.rel (%p2255) target = $region32
      $region31: #{tpu_custom_call.1} parent=27 // pred_region
        _
      $region32: #{tpu_custom_call.1} parent=27 // pred_fallthru
        _
    $region28: #{tpu_custom_call.1} parent=5 // pred_fallthru
      _
    %p2258 = scmp.le.s32.totalorder 2, %s10
    // Predicated region
    $region33: #{tpu_custom_call.1} parent=5 // pred_check
      %p2259 = pneg %p2258
    $region34: #{tpu_custom_call.1} parent=5 // pred_check_branch
      %2261 = sbr.rel (%p2259) target = $region36
    $region35: #{tpu_custom_call.1} parent=5 // pred_region
      %s2262 = ssub.s32 %s10, 2
      // Predicated region
      $region37: #{tpu_custom_call.1} parent=35 // pred_check
        %p2263 = pneg %p107
      $region38: #{tpu_custom_call.1} parent=35 // pred_check_branch
        %2265 = sbr.rel (%p2263) target = $region40
      $region39: #{tpu_custom_call.1} parent=35 // pred_region
        %p2266 = scmp.lt.s32.totalorder %s22, 1
        %s2267 = scalar_select %p2266, %s22, 1
        %p2268 = scmp.lt.s32.totalorder %s21, 0
        %s2269 = scalar_select %p2268, %s21, 0
        %s2270 = smul.addr %s2267, 32
        %s2271 = sadd.s32 %s2269, %s2270
        %s2272 = smul.addr %s2271, 8
        %s2273 = scalar_lea.vmem %s3, %s2272
      $region40: #{tpu_custom_call.1} parent=35 // pred_fallthru
        _
    $region36: #{tpu_custom_call.1} parent=5 // pred_fallthru
      _
  $region6: #{tpu_custom_call.1} parent=0 // loop_footer
    %s14 = sadd.s32 1, %s10
  $region7: #{tpu_custom_call.1} parent=0 // loop_footer_branch
    %9 = sbr.rel target = $region3
  $region8: #{tpu_custom_call.1} parent=0 // loop_exit
    _

</llo_original>
